<compile_context>
chip_gen: v6e
topology: v6e:2x2x1
jax: 0.10.0
libtpu: 0.0.40
codegen_flags: <defaults>
</compile_context>

<pallas_src>
import jax
import jax.numpy as jnp
from jax import lax
from jax.experimental import pallas as pl
from jax.experimental.pallas import tpu as pltpu

HIDDEN_DIM = 32
INPUT_DIM = 1
NUM_LAYERS = 2   # hard-wired as two explicit stacked cells below
OUTPUT_DIM = 1


def _gru_kernel(x_ref, rhs_ref, consts_ref, out_ref):
    T, B, _ = x_ref.shape
    H = HIDDEN_DIM

    # Packed RHS slab: (3H, 4H) = (96, 128) -> ~12 vregs, held across the loop.
    rhs = rhs_ref[...]

    # Constant per-row bias matrix for the fused matmul output (built once).
    b1row = consts_ref[0:1, :]                       # layer-1: [0 | 0 | b_h1n | 0]
    b2row = consts_ref[1:2, :]                       # layer-2: [b2r | b2z | b_i2n | b_h2n]
    bias_mat = jnp.concatenate(
        [jnp.broadcast_to(b1row, (B, 4 * H)),
         jnp.broadcast_to(b2row, (B, 4 * H))], axis=0)          # (2B, 4H)

    wi1_row = consts_ref[2:3, 0:3 * H]               # layer-1 input weights (D_in=1)
    bx1_row = consts_ref[3:4, 0:3 * H]               # [b_i1r+b_h1r | b_i1z+b_h1z | b_i1n]

    zH = jnp.zeros((B, H), jnp.float32)

    def gx_at(s):
        # Layer-1 input projection.  D_in == 1 -> broadcast multiply; depends
        # only on x, so it is off the recurrence critical path.
        return x_ref[s] * wi1_row + bx1_row          # (B, 3H)

    def l1_update(gx, g1, h1):
        # g1 = [h1@Wh1_r | h1@Wh1_z | h1@Wh1_n + b_h1n | .] (bias already added)
        r = jax.nn.sigmoid(gx[:, 0:H] + g1[:, 0:H])
        z = jax.nn.sigmoid(gx[:, H:2 * H] + g1[:, H:2 * H])
        n = jnp.tanh(gx[:, 2 * H:3 * H] + r * g1[:, 2 * H:3 * H])
        return (1.0 - z) * n + z * h1

    def l2_update(g2, h2):
        # g2 = [r_sum | z_sum | x@Wi2_n + b_i2n | h2@Wh2_n + b_h2n]
        r = jax.nn.sigmoid(g2[:, 0:H])
        z = jax.nn.sigmoid(g2[:, H:2 * H])
        n = jnp.tanh(g2[:, 2 * H:3 * H] + r * g2[:, 3 * H:4 * H])
        return (1.0 - z) * n + z * h2

    # ---- peel: layer-1 at t=0 (h1_{-1}=0, so its h-matmul vanishes) ----
    h1 = l1_update(gx_at(0), bias_mat[0:B], zH)      # h1_0
    h2 = zH                                          # h2_{-1} = 0

    # ---- staircase: step s computes layer1(t=s) and layer2(t=s-1); both read
    # only the previous step's carries -> ONE fused MXU matmul per step ----
    def body(s, carry):
        h1, h2 = carry
        lhs = jnp.concatenate(
            [jnp.concatenate([h1, zH, zH], axis=1),          # layer-1 rows
             jnp.concatenate([zH, h1, h2], axis=1)], axis=0)  # layer-2 rows  (2B, 3H)
        g = jnp.dot(lhs, rhs, preferred_element_type=jnp.float32) + bias_mat
        h1_new = l1_update(gx_at(s), g[0:B], h1)     # h1_s
        h2_new = l2_update(g[B:2 * B], h2)           # h2_{s-1}
        return (h1_new, h2_new)

    h1, h2 = lax.fori_loop(1, T, body, (h1, h2), unroll=True)

    # ---- finish: layer-2 at t = T-1 ----
    lhs2 = jnp.concatenate([h1, h2], axis=1)          # (B, 2H)
    g2 = jnp.dot(lhs2, rhs[H:3 * H, :],
                 preferred_element_type=jnp.float32) + bias_mat[B:2 * B]
    h2 = l2_update(g2, h2)                            # h2_{T-1}

    # ---- fc head: single lane-narrow (B, 1) writeback at the very end ----
    wfc_row = consts_ref[4:5, 0:H]                    # (1, H)
    bfc = consts_ref[5:6, 0:1]                        # (1, 1)
    out_ref[...] = (jnp.sum(h2 * wfc_row, axis=1, keepdims=True)
                    + bfc).astype(out_ref.dtype)


def pack_params(params):
    """One-time, init-level packing of all weights/biases into two slabs laid
    out exactly as the fused in-kernel matmul expects (off the per-call path)."""
    (wi1, wh1, bi1, bh1, wi2, wh2, bi2, bh2, wfc, bfc) = params
    H = HIDDEN_DIM
    f32 = jnp.float32

    # RHS slab (3H, 4H): column blocks = [r | z | n_ih | n_hh]
    rhs = jnp.zeros((3 * H, 4 * H), f32)
    rhs = rhs.at[0:H, 0:3 * H].set(wh1.astype(f32))                 # Wh1_r|Wh1_z|Wh1_n
    rhs = rhs.at[H:2 * H, 0:3 * H].set(wi2.astype(f32))             # Wi2_r|Wi2_z|Wi2_n
    rhs = rhs.at[2 * H:3 * H, 0:H].set(wh2[:, 0:H].astype(f32))     # Wh2_r
    rhs = rhs.at[2 * H:3 * H, H:2 * H].set(wh2[:, H:2 * H].astype(f32))        # Wh2_z
    rhs = rhs.at[2 * H:3 * H, 3 * H:4 * H].set(wh2[:, 2 * H:3 * H].astype(f32))  # Wh2_n

    # Consts slab (8, 4H) == exactly one vreg.
    consts = jnp.zeros((8, 4 * H), f32)
    # row 0: layer-1 bias row for the matmul output (only the hh n-gate bias,
    #        which must stay inside r * (.)).
    consts = consts.at[0, 2 * H:3 * H].set(bh1[0, 2 * H:3 * H])
    # row 1: layer-2 bias row  [b_i2r+b_h2r | b_i2z+b_h2z | b_i2n | b_h2n]
    consts = consts.at[1, 0:H].set(bi2[0, 0:H] + bh2[0, 0:H])
    consts = consts.at[1, H:2 * H].set(bi2[0, H:2 * H] + bh2[0, H:2 * H])
    consts = consts.at[1, 2 * H:3 * H].set(bi2[0, 2 * H:3 * H])
    consts = consts.at[1, 3 * H:4 * H].set(bh2[0, 2 * H:3 * H])
    # row 2: layer-1 input weights (D_in = 1 -> a single row).
    consts = consts.at[2, 0:3 * H].set(wi1[0])
    # row 3: layer-1 input-side bias  [b_i1r+b_h1r | b_i1z+b_h1z | b_i1n]
    consts = consts.at[3, 0:H].set(bi1[0, 0:H] + bh1[0, 0:H])
    consts = consts.at[3, H:2 * H].set(bi1[0, H:2 * H] + bh1[0, H:2 * H])
    consts = consts.at[3, 2 * H:3 * H].set(bi1[0, 2 * H:3 * H])
    # row 4: fc weight; row 5: fc bias.
    consts = consts.at[4, 0:H].set(wfc[:, 0])
    consts = consts.at[5, 0].set(bfc[0, 0])

    return (rhs, consts)


@jax.jit
def gru_forward(x, packed):
    """x: (B, T, 1) batch-first (same as the PyTorch module). Returns (B, 1)."""
    rhs, consts = packed
    B, T, _ = x.shape
    x_tb = jnp.transpose(x, (1, 0, 2)).astype(jnp.float32)   # time-major (T, B, 1)

    def full_spec(a):
        nd = a.ndim
        return pl.BlockSpec(a.shape, lambda i, _nd=nd: (0,) * _nd)

    out = pl.pallas_call(
        _gru_kernel,
        out_shape=jax.ShapeDtypeStruct((B, OUTPUT_DIM), jnp.float32),
        grid=(1,),                                   # whole recurrence in one grid step
        in_specs=[full_spec(x_tb), full_spec(rhs), full_spec(consts)],
        out_specs=pl.BlockSpec((B, OUTPUT_DIM), lambda i: (0, 0)),
        compiler_params=pltpu.CompilerParams(
            dimension_semantics=("arbitrary",)),
    )(x_tb, rhs, consts)
    return out


def init_params(key):
    """Deterministic init matching PyTorch shapes (weights stored transposed
    so the math computes x @ W^T as x @ W_t)."""
    H, D = HIDDEN_DIM, INPUT_DIM
    bound = 1.0 / (H ** 0.5)
    ks = jax.random.split(key, 10)

    def u(k_, shape):
        return jax.random.uniform(k_, shape, jnp.float32, -bound, bound)

    wi1 = u(ks[0], (D, 3 * H))          # weight_ih_l0^T  (input_dim, 3H)
    wh1 = u(ks[1], (H, 3 * H))          # weight_hh_l0^T
    bi1 = u(ks[2], (1, 3 * H))          # bias_ih_l0
    bh1 = u(ks[3], (1, 3 * H))          # bias_hh_l0
    wi2 = u(ks[4], (H, 3 * H))          # weight_ih_l1^T  (hidden_dim, 3H)
    wh2 = u(ks[5], (H, 3 * H))          # weight_hh_l1^T
    bi2 = u(ks[6], (1, 3 * H))          # bias_ih_l1
    bh2 = u(ks[7], (1, 3 * H))          # bias_hh_l1
    wfc = u(ks[8], (H, OUTPUT_DIM))     # fc.weight^T
    bfc = u(ks[9], (1, OUTPUT_DIM))     # fc.bias
    return (wi1, wh1, bi1, bh1, wi2, wh2, bi2, bh2, wfc, bfc)


def gru_reference(x, params):
    """Plain-JAX reference of the same forward pass (PyTorch nn.GRU semantics)."""
    (wi1, wh1, bi1, bh1, wi2, wh2, bi2, bh2, wfc, bfc) = params
    B, T, _ = x.shape
    H = HIDDEN_DIM

    def cell(x_t, h_prev, wi, wh, bi, bh):
        gi = x_t @ wi + bi
        gh = h_prev @ wh + bh
        r = jax.nn.sigmoid(gi[:, :H] + gh[:, :H])
        z = jax.nn.sigmoid(gi[:, H:2 * H] + gh[:, H:2 * H])
        n = jnp.tanh(gi[:, 2 * H:] + r * gh[:, 2 * H:])
        return (1.0 - z) * n + z * h_prev

    h1 = jnp.zeros((B, H), jnp.float32)
    h2 = jnp.zeros((B, H), jnp.float32)
    for t in range(T):
        h1 = cell(x[:, t, :], h1, wi1, wh1, bi1, bh1)
        h2 = cell(h1, h2, wi2, wh2, bi2, bh2)
    return h2 @ wfc + bfc


if __name__ == "__main__":
    key = jax.random.PRNGKey(0)
    k_x, k_p = jax.random.split(key)

    B, T = 2, 8
    x = jax.random.normal(k_x, (B, T, INPUT_DIM), jnp.float32)   # (batch, seq, input_dim)
    params = init_params(k_p)
    packed = pack_params(params)          # init-time packing, off the per-call path

    out = gru_forward(x, packed)
    out = jax.block_until_ready(out)

    ref = gru_reference(x, params)
    assert out.shape == (B, OUTPUT_DIM)
    assert jnp.allclose(out, ref, atol=1e-4, rtol=1e-4), (out, ref)

    print("KERNEL_OK")
</pallas_src>

<mosaic_0001>
module attributes {stable_mosaic.version = 11 : i64} {
  func.func @_gru_kernel(%arg0: i32, %arg1: memref<8x2x1xf32, #tpu.memory_space<vmem>>, %arg2: memref<96x128xf32, #tpu.memory_space<vmem>>, %arg3: memref<8x128xf32, #tpu.memory_space<vmem>>, %arg4: memref<2x1xf32, #tpu.memory_space<vmem>>) attributes {dimension_semantics = [#tpu.dimension_semantics<arbitrary>], iteration_bounds = array<i64: 1>, scalar_prefetch = 0 : i64, scratch_operands = 0 : i64, tpu.core_type = #tpu.core_type<tc>, window_params = [{pipeline_mode = #tpu.pipeline_mode<synchronous>, transform_indices = @transform_0, window_bounds = array<i64: 8, 2, 1>}, {pipeline_mode = #tpu.pipeline_mode<synchronous>, transform_indices = @transform_1, window_bounds = array<i64: 96, 128>}, {pipeline_mode = #tpu.pipeline_mode<synchronous>, transform_indices = @transform_2, window_bounds = array<i64: 8, 128>}, {pipeline_mode = #tpu.pipeline_mode<synchronous>, transform_indices = @transform_3, window_bounds = array<i64: 2, 1>}]} {
    %c0 = arith.constant 0 : index
    %c0_0 = arith.constant 0 : index
    %0 = vector.load %arg2[%c0, %c0_0] : memref<96x128xf32, #tpu.memory_space<vmem>>, vector<96x128xf32>
    %c0_1 = arith.constant 0 : index
    %c0_2 = arith.constant 0 : index
    %1 = vector.load %arg3[%c0_1, %c0_2] : memref<8x128xf32, #tpu.memory_space<vmem>>, vector<1x128xf32>
    %c1 = arith.constant 1 : index
    %c0_3 = arith.constant 0 : index
    %2 = vector.load %arg3[%c1, %c0_3] : memref<8x128xf32, #tpu.memory_space<vmem>>, vector<1x128xf32>
    %3 = vector.shape_cast %1 : vector<1x128xf32> to vector<1x128xf32>
    %4 = vector.broadcast %3 : vector<1x128xf32> to vector<2x128xf32>
    %5 = vector.shape_cast %2 : vector<1x128xf32> to vector<1x128xf32>
    %6 = vector.broadcast %5 : vector<1x128xf32> to vector<2x128xf32>
    %7 = tpu.concatenate %4, %6 in 0 : vector<2x128xf32>, vector<2x128xf32> -> vector<4x128xf32>
    %c2 = arith.constant 2 : index
    %c0_4 = arith.constant 0 : index
    %8 = vector.load %arg3[%c2, %c0_4] : memref<8x128xf32, #tpu.memory_space<vmem>>, vector<1x96xf32>
    %c3 = arith.constant 3 : index
    %c0_5 = arith.constant 0 : index
    %9 = vector.load %arg3[%c3, %c0_5] : memref<8x128xf32, #tpu.memory_space<vmem>>, vector<1x96xf32>
    %cst = arith.constant 0.000000e+00 : f32
    %10 = vector.broadcast %cst : f32 to vector<2x32xf32>
    %c0_6 = arith.constant 0 : index
    %c0_7 = arith.constant 0 : index
    %c0_8 = arith.constant 0 : index
    %11 = vector.load %arg1[%c0_6, %c0_7, %c0_8] : memref<8x2x1xf32, #tpu.memory_space<vmem>>, vector<1x2x1xf32>
    %12 = vector.shape_cast %11 : vector<1x2x1xf32> to vector<2x1xf32>
    %13 = vector.broadcast %12 : vector<2x1xf32> to vector<2x96xf32>
    %14 = vector.broadcast %8 : vector<1x96xf32> to vector<2x96xf32>
    %15 = arith.mulf %13, %14 : vector<2x96xf32>
    %16 = vector.broadcast %9 : vector<1x96xf32> to vector<2x96xf32>
    %17 = arith.addf %15, %16 : vector<2x96xf32>
    %18 = vector.extract_strided_slice %7 {offsets = [0, 0], sizes = [2, 128], strides = [1, 1]} : vector<4x128xf32> to vector<2x128xf32>
    %19 = vector.extract_strided_slice %17 {offsets = [0, 0], sizes = [2, 32], strides = [1, 1]} : vector<2x96xf32> to vector<2x32xf32>
    %20 = vector.extract_strided_slice %18 {offsets = [0, 0], sizes = [2, 32], strides = [1, 1]} : vector<2x128xf32> to vector<2x32xf32>
    %21 = arith.addf %19, %20 : vector<2x32xf32>
    %22 = arith.negf %21 : vector<2x32xf32>
    %23 = math.exp %22 : vector<2x32xf32>
    %cst_9 = arith.constant 1.000000e+00 : f32
    %24 = vector.broadcast %cst_9 : f32 to vector<2x32xf32>
    %25 = arith.addf %24, %23 : vector<2x32xf32>
    %26 = arith.divf %24, %25 : vector<2x32xf32>
    %27 = vector.extract_strided_slice %17 {offsets = [0, 32], sizes = [2, 32], strides = [1, 1]} : vector<2x96xf32> to vector<2x32xf32>
    %28 = vector.extract_strided_slice %18 {offsets = [0, 32], sizes = [2, 32], strides = [1, 1]} : vector<2x128xf32> to vector<2x32xf32>
    %29 = arith.addf %27, %28 : vector<2x32xf32>
    %30 = arith.negf %29 : vector<2x32xf32>
    %31 = math.exp %30 : vector<2x32xf32>
    %cst_10 = arith.constant 1.000000e+00 : f32
    %32 = vector.broadcast %cst_10 : f32 to vector<2x32xf32>
    %33 = arith.addf %32, %31 : vector<2x32xf32>
    %34 = arith.divf %32, %33 : vector<2x32xf32>
    %35 = vector.extract_strided_slice %17 {offsets = [0, 64], sizes = [2, 32], strides = [1, 1]} : vector<2x96xf32> to vector<2x32xf32>
    %36 = vector.extract_strided_slice %18 {offsets = [0, 64], sizes = [2, 32], strides = [1, 1]} : vector<2x128xf32> to vector<2x32xf32>
    %37 = arith.mulf %26, %36 : vector<2x32xf32>
    %38 = arith.addf %35, %37 : vector<2x32xf32>
    %39 = math.tanh %38 : vector<2x32xf32>
    %cst_11 = arith.constant 1.000000e+00 : f32
    %40 = vector.broadcast %cst_11 : f32 to vector<2x32xf32>
    %41 = arith.subf %40, %34 : vector<2x32xf32>
    %42 = arith.mulf %41, %39 : vector<2x32xf32>
    %43 = arith.mulf %34, %10 : vector<2x32xf32>
    %44 = arith.addf %42, %43 : vector<2x32xf32>
    %c1_i32 = arith.constant 1 : i32
    %45 = tpu.concatenate %44, %10, %10 in 1 : vector<2x32xf32>, vector<2x32xf32>, vector<2x32xf32> -> vector<2x96xf32>
    %46 = tpu.concatenate %10, %44, %10 in 1 : vector<2x32xf32>, vector<2x32xf32>, vector<2x32xf32> -> vector<2x96xf32>
    %47 = tpu.concatenate %45, %46 in 0 : vector<2x96xf32>, vector<2x96xf32> -> vector<4x96xf32>
    %cst_12 = arith.constant dense<0.000000e+00> : vector<4x128xf32>
    %48 = tpu.matmul %47, %0, %cst_12 {dimension_numbers = #tpu.dot_dimension_numbers<[1], [0], [0], [1], [0, 0, 1, 1], [], []>} : vector<4x96xf32>, vector<96x128xf32>, vector<4x128xf32> -> vector<4x128xf32>
    %49 = arith.addf %48, %7 : vector<4x128xf32>
    %50 = arith.index_cast %c1_i32 : i32 to index
    %c0_13 = arith.constant 0 : index
    %c0_14 = arith.constant 0 : index
    %51 = vector.load %arg1[%50, %c0_13, %c0_14] : memref<8x2x1xf32, #tpu.memory_space<vmem>>, vector<1x2x1xf32>
    %52 = vector.shape_cast %51 : vector<1x2x1xf32> to vector<2x1xf32>
    %53 = vector.broadcast %52 : vector<2x1xf32> to vector<2x96xf32>
    %54 = vector.broadcast %8 : vector<1x96xf32> to vector<2x96xf32>
    %55 = arith.mulf %53, %54 : vector<2x96xf32>
    %56 = vector.broadcast %9 : vector<1x96xf32> to vector<2x96xf32>
    %57 = arith.addf %55, %56 : vector<2x96xf32>
    %58 = vector.extract_strided_slice %49 {offsets = [0, 0], sizes = [2, 128], strides = [1, 1]} : vector<4x128xf32> to vector<2x128xf32>
    %59 = vector.extract_strided_slice %57 {offsets = [0, 0], sizes = [2, 32], strides = [1, 1]} : vector<2x96xf32> to vector<2x32xf32>
    %60 = vector.extract_strided_slice %58 {offsets = [0, 0], sizes = [2, 32], strides = [1, 1]} : vector<2x128xf32> to vector<2x32xf32>
    %61 = arith.addf %59, %60 : vector<2x32xf32>
    %62 = arith.negf %61 : vector<2x32xf32>
    %63 = math.exp %62 : vector<2x32xf32>
    %cst_15 = arith.constant 1.000000e+00 : f32
    %64 = vector.broadcast %cst_15 : f32 to vector<2x32xf32>
    %65 = arith.addf %64, %63 : vector<2x32xf32>
    %66 = arith.divf %64, %65 : vector<2x32xf32>
    %67 = vector.extract_strided_slice %57 {offsets = [0, 32], sizes = [2, 32], strides = [1, 1]} : vector<2x96xf32> to vector<2x32xf32>
    %68 = vector.extract_strided_slice %58 {offsets = [0, 32], sizes = [2, 32], strides = [1, 1]} : vector<2x128xf32> to vector<2x32xf32>
    %69 = arith.addf %67, %68 : vector<2x32xf32>
    %70 = arith.negf %69 : vector<2x32xf32>
    %71 = math.exp %70 : vector<2x32xf32>
    %cst_16 = arith.constant 1.000000e+00 : f32
    %72 = vector.broadcast %cst_16 : f32 to vector<2x32xf32>
    %73 = arith.addf %72, %71 : vector<2x32xf32>
    %74 = arith.divf %72, %73 : vector<2x32xf32>
    %75 = vector.extract_strided_slice %57 {offsets = [0, 64], sizes = [2, 32], strides = [1, 1]} : vector<2x96xf32> to vector<2x32xf32>
    %76 = vector.extract_strided_slice %58 {offsets = [0, 64], sizes = [2, 32], strides = [1, 1]} : vector<2x128xf32> to vector<2x32xf32>
    %77 = arith.mulf %66, %76 : vector<2x32xf32>
    %78 = arith.addf %75, %77 : vector<2x32xf32>
    %79 = math.tanh %78 : vector<2x32xf32>
    %cst_17 = arith.constant 1.000000e+00 : f32
    %80 = vector.broadcast %cst_17 : f32 to vector<2x32xf32>
    %81 = arith.subf %80, %74 : vector<2x32xf32>
    %82 = arith.mulf %81, %79 : vector<2x32xf32>
    %83 = arith.mulf %74, %44 : vector<2x32xf32>
    %84 = arith.addf %82, %83 : vector<2x32xf32>
    %85 = vector.extract_strided_slice %49 {offsets = [2, 0], sizes = [2, 128], strides = [1, 1]} : vector<4x128xf32> to vector<2x128xf32>
    %86 = vector.extract_strided_slice %85 {offsets = [0, 0], sizes = [2, 32], strides = [1, 1]} : vector<2x128xf32> to vector<2x32xf32>
    %87 = arith.negf %86 : vector<2x32xf32>
    %88 = math.exp %87 : vector<2x32xf32>
    %cst_18 = arith.constant 1.000000e+00 : f32
    %89 = vector.broadcast %cst_18 : f32 to vector<2x32xf32>
    %90 = arith.addf %89, %88 : vector<2x32xf32>
    %91 = arith.divf %89, %90 : vector<2x32xf32>
    %92 = vector.extract_strided_slice %85 {offsets = [0, 32], sizes = [2, 32], strides = [1, 1]} : vector<2x128xf32> to vector<2x32xf32>
    %93 = arith.negf %92 : vector<2x32xf32>
    %94 = math.exp %93 : vector<2x32xf32>
    %cst_19 = arith.constant 1.000000e+00 : f32
    %95 = vector.broadcast %cst_19 : f32 to vector<2x32xf32>
    %96 = arith.addf %95, %94 : vector<2x32xf32>
    %97 = arith.divf %95, %96 : vector<2x32xf32>
    %98 = vector.extract_strided_slice %85 {offsets = [0, 64], sizes = [2, 32], strides = [1, 1]} : vector<2x128xf32> to vector<2x32xf32>
    %99 = vector.extract_strided_slice %85 {offsets = [0, 96], sizes = [2, 32], strides = [1, 1]} : vector<2x128xf32> to vector<2x32xf32>
    %100 = arith.mulf %91, %99 : vector<2x32xf32>
    %101 = arith.addf %98, %100 : vector<2x32xf32>
    %102 = math.tanh %101 : vector<2x32xf32>
    %cst_20 = arith.constant 1.000000e+00 : f32
    %103 = vector.broadcast %cst_20 : f32 to vector<2x32xf32>
    %104 = arith.subf %103, %97 : vector<2x32xf32>
    %105 = arith.mulf %104, %102 : vector<2x32xf32>
    %106 = arith.mulf %97, %10 : vector<2x32xf32>
    %107 = arith.addf %105, %106 : vector<2x32xf32>
    %c2_i32 = arith.constant 2 : i32
    %108 = tpu.concatenate %84, %10, %10 in 1 : vector<2x32xf32>, vector<2x32xf32>, vector<2x32xf32> -> vector<2x96xf32>
    %109 = tpu.concatenate %10, %84, %107 in 1 : vector<2x32xf32>, vector<2x32xf32>, vector<2x32xf32> -> vector<2x96xf32>
    %110 = tpu.concatenate %108, %109 in 0 : vector<2x96xf32>, vector<2x96xf32> -> vector<4x96xf32>
    %cst_21 = arith.constant dense<0.000000e+00> : vector<4x128xf32>
    %111 = tpu.matmul %110, %0, %cst_21 {dimension_numbers = #tpu.dot_dimension_numbers<[1], [0], [0], [1], [0, 0, 1, 1], [], []>} : vector<4x96xf32>, vector<96x128xf32>, vector<4x128xf32> -> vector<4x128xf32>
    %112 = arith.addf %111, %7 : vector<4x128xf32>
    %113 = arith.index_cast %c2_i32 : i32 to index
    %c0_22 = arith.constant 0 : index
    %c0_23 = arith.constant 0 : index
    %114 = vector.load %arg1[%113, %c0_22, %c0_23] : memref<8x2x1xf32, #tpu.memory_space<vmem>>, vector<1x2x1xf32>
    %115 = vector.shape_cast %114 : vector<1x2x1xf32> to vector<2x1xf32>
    %116 = vector.broadcast %115 : vector<2x1xf32> to vector<2x96xf32>
    %117 = vector.broadcast %8 : vector<1x96xf32> to vector<2x96xf32>
    %118 = arith.mulf %116, %117 : vector<2x96xf32>
    %119 = vector.broadcast %9 : vector<1x96xf32> to vector<2x96xf32>
    %120 = arith.addf %118, %119 : vector<2x96xf32>
    %121 = vector.extract_strided_slice %112 {offsets = [0, 0], sizes = [2, 128], strides = [1, 1]} : vector<4x128xf32> to vector<2x128xf32>
    %122 = vector.extract_strided_slice %120 {offsets = [0, 0], sizes = [2, 32], strides = [1, 1]} : vector<2x96xf32> to vector<2x32xf32>
    %123 = vector.extract_strided_slice %121 {offsets = [0, 0], sizes = [2, 32], strides = [1, 1]} : vector<2x128xf32> to vector<2x32xf32>
    %124 = arith.addf %122, %123 : vector<2x32xf32>
    %125 = arith.negf %124 : vector<2x32xf32>
    %126 = math.exp %125 : vector<2x32xf32>
    %cst_24 = arith.constant 1.000000e+00 : f32
    %127 = vector.broadcast %cst_24 : f32 to vector<2x32xf32>
    %128 = arith.addf %127, %126 : vector<2x32xf32>
    %129 = arith.divf %127, %128 : vector<2x32xf32>
    %130 = vector.extract_strided_slice %120 {offsets = [0, 32], sizes = [2, 32], strides = [1, 1]} : vector<2x96xf32> to vector<2x32xf32>
    %131 = vector.extract_strided_slice %121 {offsets = [0, 32], sizes = [2, 32], strides = [1, 1]} : vector<2x128xf32> to vector<2x32xf32>
    %132 = arith.addf %130, %131 : vector<2x32xf32>
    %133 = arith.negf %132 : vector<2x32xf32>
    %134 = math.exp %133 : vector<2x32xf32>
    %cst_25 = arith.constant 1.000000e+00 : f32
    %135 = vector.broadcast %cst_25 : f32 to vector<2x32xf32>
    %136 = arith.addf %135, %134 : vector<2x32xf32>
    %137 = arith.divf %135, %136 : vector<2x32xf32>
    %138 = vector.extract_strided_slice %120 {offsets = [0, 64], sizes = [2, 32], strides = [1, 1]} : vector<2x96xf32> to vector<2x32xf32>
    %139 = vector.extract_strided_slice %121 {offsets = [0, 64], sizes = [2, 32], strides = [1, 1]} : vector<2x128xf32> to vector<2x32xf32>
    %140 = arith.mulf %129, %139 : vector<2x32xf32>
    %141 = arith.addf %138, %140 : vector<2x32xf32>
    %142 = math.tanh %141 : vector<2x32xf32>
    %cst_26 = arith.constant 1.000000e+00 : f32
    %143 = vector.broadcast %cst_26 : f32 to vector<2x32xf32>
    %144 = arith.subf %143, %137 : vector<2x32xf32>
    %145 = arith.mulf %144, %142 : vector<2x32xf32>
    %146 = arith.mulf %137, %84 : vector<2x32xf32>
    %147 = arith.addf %145, %146 : vector<2x32xf32>
    %148 = vector.extract_strided_slice %112 {offsets = [2, 0], sizes = [2, 128], strides = [1, 1]} : vector<4x128xf32> to vector<2x128xf32>
    %149 = vector.extract_strided_slice %148 {offsets = [0, 0], sizes = [2, 32], strides = [1, 1]} : vector<2x128xf32> to vector<2x32xf32>
    %150 = arith.negf %149 : vector<2x32xf32>
    %151 = math.exp %150 : vector<2x32xf32>
    %cst_27 = arith.constant 1.000000e+00 : f32
    %152 = vector.broadcast %cst_27 : f32 to vector<2x32xf32>
    %153 = arith.addf %152, %151 : vector<2x32xf32>
    %154 = arith.divf %152, %153 : vector<2x32xf32>
    %155 = vector.extract_strided_slice %148 {offsets = [0, 32], sizes = [2, 32], strides = [1, 1]} : vector<2x128xf32> to vector<2x32xf32>
    %156 = arith.negf %155 : vector<2x32xf32>
    %157 = math.exp %156 : vector<2x32xf32>
    %cst_28 = arith.constant 1.000000e+00 : f32
    %158 = vector.broadcast %cst_28 : f32 to vector<2x32xf32>
    %159 = arith.addf %158, %157 : vector<2x32xf32>
    %160 = arith.divf %158, %159 : vector<2x32xf32>
    %161 = vector.extract_strided_slice %148 {offsets = [0, 64], sizes = [2, 32], strides = [1, 1]} : vector<2x128xf32> to vector<2x32xf32>
    %162 = vector.extract_strided_slice %148 {offsets = [0, 96], sizes = [2, 32], strides = [1, 1]} : vector<2x128xf32> to vector<2x32xf32>
    %163 = arith.mulf %154, %162 : vector<2x32xf32>
    %164 = arith.addf %161, %163 : vector<2x32xf32>
    %165 = math.tanh %164 : vector<2x32xf32>
    %cst_29 = arith.constant 1.000000e+00 : f32
    %166 = vector.broadcast %cst_29 : f32 to vector<2x32xf32>
    %167 = arith.subf %166, %160 : vector<2x32xf32>
    %168 = arith.mulf %167, %165 : vector<2x32xf32>
    %169 = arith.mulf %160, %107 : vector<2x32xf32>
    %170 = arith.addf %168, %169 : vector<2x32xf32>
    %c3_i32 = arith.constant 3 : i32
    %171 = tpu.concatenate %147, %10, %10 in 1 : vector<2x32xf32>, vector<2x32xf32>, vector<2x32xf32> -> vector<2x96xf32>
    %172 = tpu.concatenate %10, %147, %170 in 1 : vector<2x32xf32>, vector<2x32xf32>, vector<2x32xf32> -> vector<2x96xf32>
    %173 = tpu.concatenate %171, %172 in 0 : vector<2x96xf32>, vector<2x96xf32> -> vector<4x96xf32>
    %cst_30 = arith.constant dense<0.000000e+00> : vector<4x128xf32>
    %174 = tpu.matmul %173, %0, %cst_30 {dimension_numbers = #tpu.dot_dimension_numbers<[1], [0], [0], [1], [0, 0, 1, 1], [], []>} : vector<4x96xf32>, vector<96x128xf32>, vector<4x128xf32> -> vector<4x128xf32>
    %175 = arith.addf %174, %7 : vector<4x128xf32>
    %176 = arith.index_cast %c3_i32 : i32 to index
    %c0_31 = arith.constant 0 : index
    %c0_32 = arith.constant 0 : index
    %177 = vector.load %arg1[%176, %c0_31, %c0_32] : memref<8x2x1xf32, #tpu.memory_space<vmem>>, vector<1x2x1xf32>
    %178 = vector.shape_cast %177 : vector<1x2x1xf32> to vector<2x1xf32>
    %179 = vector.broadcast %178 : vector<2x1xf32> to vector<2x96xf32>
    %180 = vector.broadcast %8 : vector<1x96xf32> to vector<2x96xf32>
    %181 = arith.mulf %179, %180 : vector<2x96xf32>
    %182 = vector.broadcast %9 : vector<1x96xf32> to vector<2x96xf32>
    %183 = arith.addf %181, %182 : vector<2x96xf32>
    %184 = vector.extract_strided_slice %175 {offsets = [0, 0], sizes = [2, 128], strides = [1, 1]} : vector<4x128xf32> to vector<2x128xf32>
    %185 = vector.extract_strided_slice %183 {offsets = [0, 0], sizes = [2, 32], strides = [1, 1]} : vector<2x96xf32> to vector<2x32xf32>
    %186 = vector.extract_strided_slice %184 {offsets = [0, 0], sizes = [2, 32], strides = [1, 1]} : vector<2x128xf32> to vector<2x32xf32>
    %187 = arith.addf %185, %186 : vector<2x32xf32>
    %188 = arith.negf %187 : vector<2x32xf32>
    %189 = math.exp %188 : vector<2x32xf32>
    %cst_33 = arith.constant 1.000000e+00 : f32
    %190 = vector.broadcast %cst_33 : f32 to vector<2x32xf32>
    %191 = arith.addf %190, %189 : vector<2x32xf32>
    %192 = arith.divf %190, %191 : vector<2x32xf32>
    %193 = vector.extract_strided_slice %183 {offsets = [0, 32], sizes = [2, 32], strides = [1, 1]} : vector<2x96xf32> to vector<2x32xf32>
    %194 = vector.extract_strided_slice %184 {offsets = [0, 32], sizes = [2, 32], strides = [1, 1]} : vector<2x128xf32> to vector<2x32xf32>
    %195 = arith.addf %193, %194 : vector<2x32xf32>
    %196 = arith.negf %195 : vector<2x32xf32>
    %197 = math.exp %196 : vector<2x32xf32>
    %cst_34 = arith.constant 1.000000e+00 : f32
    %198 = vector.broadcast %cst_34 : f32 to vector<2x32xf32>
    %199 = arith.addf %198, %197 : vector<2x32xf32>
    %200 = arith.divf %198, %199 : vector<2x32xf32>
    %201 = vector.extract_strided_slice %183 {offsets = [0, 64], sizes = [2, 32], strides = [1, 1]} : vector<2x96xf32> to vector<2x32xf32>
    %202 = vector.extract_strided_slice %184 {offsets = [0, 64], sizes = [2, 32], strides = [1, 1]} : vector<2x128xf32> to vector<2x32xf32>
    %203 = arith.mulf %192, %202 : vector<2x32xf32>
    %204 = arith.addf %201, %203 : vector<2x32xf32>
    %205 = math.tanh %204 : vector<2x32xf32>
    %cst_35 = arith.constant 1.000000e+00 : f32
    %206 = vector.broadcast %cst_35 : f32 to vector<2x32xf32>
    %207 = arith.subf %206, %200 : vector<2x32xf32>
    %208 = arith.mulf %207, %205 : vector<2x32xf32>
    %209 = arith.mulf %200, %147 : vector<2x32xf32>
    %210 = arith.addf %208, %209 : vector<2x32xf32>
    %211 = vector.extract_strided_slice %175 {offsets = [2, 0], sizes = [2, 128], strides = [1, 1]} : vector<4x128xf32> to vector<2x128xf32>
    %212 = vector.extract_strided_slice %211 {offsets = [0, 0], sizes = [2, 32], strides = [1, 1]} : vector<2x128xf32> to vector<2x32xf32>
    %213 = arith.negf %212 : vector<2x32xf32>
    %214 = math.exp %213 : vector<2x32xf32>
    %cst_36 = arith.constant 1.000000e+00 : f32
    %215 = vector.broadcast %cst_36 : f32 to vector<2x32xf32>
    %216 = arith.addf %215, %214 : vector<2x32xf32>
    %217 = arith.divf %215, %216 : vector<2x32xf32>
    %218 = vector.extract_strided_slice %211 {offsets = [0, 32], sizes = [2, 32], strides = [1, 1]} : vector<2x128xf32> to vector<2x32xf32>
    %219 = arith.negf %218 : vector<2x32xf32>
    %220 = math.exp %219 : vector<2x32xf32>
    %cst_37 = arith.constant 1.000000e+00 : f32
    %221 = vector.broadcast %cst_37 : f32 to vector<2x32xf32>
    %222 = arith.addf %221, %220 : vector<2x32xf32>
    %223 = arith.divf %221, %222 : vector<2x32xf32>
    %224 = vector.extract_strided_slice %211 {offsets = [0, 64], sizes = [2, 32], strides = [1, 1]} : vector<2x128xf32> to vector<2x32xf32>
    %225 = vector.extract_strided_slice %211 {offsets = [0, 96], sizes = [2, 32], strides = [1, 1]} : vector<2x128xf32> to vector<2x32xf32>
    %226 = arith.mulf %217, %225 : vector<2x32xf32>
    %227 = arith.addf %224, %226 : vector<2x32xf32>
    %228 = math.tanh %227 : vector<2x32xf32>
    %cst_38 = arith.constant 1.000000e+00 : f32
    %229 = vector.broadcast %cst_38 : f32 to vector<2x32xf32>
    %230 = arith.subf %229, %223 : vector<2x32xf32>
    %231 = arith.mulf %230, %228 : vector<2x32xf32>
    %232 = arith.mulf %223, %170 : vector<2x32xf32>
    %233 = arith.addf %231, %232 : vector<2x32xf32>
    %c4_i32 = arith.constant 4 : i32
    %234 = tpu.concatenate %210, %10, %10 in 1 : vector<2x32xf32>, vector<2x32xf32>, vector<2x32xf32> -> vector<2x96xf32>
    %235 = tpu.concatenate %10, %210, %233 in 1 : vector<2x32xf32>, vector<2x32xf32>, vector<2x32xf32> -> vector<2x96xf32>
    %236 = tpu.concatenate %234, %235 in 0 : vector<2x96xf32>, vector<2x96xf32> -> vector<4x96xf32>
    %cst_39 = arith.constant dense<0.000000e+00> : vector<4x128xf32>
    %237 = tpu.matmul %236, %0, %cst_39 {dimension_numbers = #tpu.dot_dimension_numbers<[1], [0], [0], [1], [0, 0, 1, 1], [], []>} : vector<4x96xf32>, vector<96x128xf32>, vector<4x128xf32> -> vector<4x128xf32>
    %238 = arith.addf %237, %7 : vector<4x128xf32>
    %239 = arith.index_cast %c4_i32 : i32 to index
    %c0_40 = arith.constant 0 : index
    %c0_41 = arith.constant 0 : index
    %240 = vector.load %arg1[%239, %c0_40, %c0_41] : memref<8x2x1xf32, #tpu.memory_space<vmem>>, vector<1x2x1xf32>
    %241 = vector.shape_cast %240 : vector<1x2x1xf32> to vector<2x1xf32>
    %242 = vector.broadcast %241 : vector<2x1xf32> to vector<2x96xf32>
    %243 = vector.broadcast %8 : vector<1x96xf32> to vector<2x96xf32>
    %244 = arith.mulf %242, %243 : vector<2x96xf32>
    %245 = vector.broadcast %9 : vector<1x96xf32> to vector<2x96xf32>
    %246 = arith.addf %244, %245 : vector<2x96xf32>
    %247 = vector.extract_strided_slice %238 {offsets = [0, 0], sizes = [2, 128], strides = [1, 1]} : vector<4x128xf32> to vector<2x128xf32>
    %248 = vector.extract_strided_slice %246 {offsets = [0, 0], sizes = [2, 32], strides = [1, 1]} : vector<2x96xf32> to vector<2x32xf32>
    %249 = vector.extract_strided_slice %247 {offsets = [0, 0], sizes = [2, 32], strides = [1, 1]} : vector<2x128xf32> to vector<2x32xf32>
    %250 = arith.addf %248, %249 : vector<2x32xf32>
    %251 = arith.negf %250 : vector<2x32xf32>
    %252 = math.exp %251 : vector<2x32xf32>
    %cst_42 = arith.constant 1.000000e+00 : f32
    %253 = vector.broadcast %cst_42 : f32 to vector<2x32xf32>
    %254 = arith.addf %253, %252 : vector<2x32xf32>
    %255 = arith.divf %253, %254 : vector<2x32xf32>
    %256 = vector.extract_strided_slice %246 {offsets = [0, 32], sizes = [2, 32], strides = [1, 1]} : vector<2x96xf32> to vector<2x32xf32>
    %257 = vector.extract_strided_slice %247 {offsets = [0, 32], sizes = [2, 32], strides = [1, 1]} : vector<2x128xf32> to vector<2x32xf32>
    %258 = arith.addf %256, %257 : vector<2x32xf32>
    %259 = arith.negf %258 : vector<2x32xf32>
    %260 = math.exp %259 : vector<2x32xf32>
    %cst_43 = arith.constant 1.000000e+00 : f32
    %261 = vector.broadcast %cst_43 : f32 to vector<2x32xf32>
    %262 = arith.addf %261, %260 : vector<2x32xf32>
    %263 = arith.divf %261, %262 : vector<2x32xf32>
    %264 = vector.extract_strided_slice %246 {offsets = [0, 64], sizes = [2, 32], strides = [1, 1]} : vector<2x96xf32> to vector<2x32xf32>
    %265 = vector.extract_strided_slice %247 {offsets = [0, 64], sizes = [2, 32], strides = [1, 1]} : vector<2x128xf32> to vector<2x32xf32>
    %266 = arith.mulf %255, %265 : vector<2x32xf32>
    %267 = arith.addf %264, %266 : vector<2x32xf32>
    %268 = math.tanh %267 : vector<2x32xf32>
    %cst_44 = arith.constant 1.000000e+00 : f32
    %269 = vector.broadcast %cst_44 : f32 to vector<2x32xf32>
    %270 = arith.subf %269, %263 : vector<2x32xf32>
    %271 = arith.mulf %270, %268 : vector<2x32xf32>
    %272 = arith.mulf %263, %210 : vector<2x32xf32>
    %273 = arith.addf %271, %272 : vector<2x32xf32>
    %274 = vector.extract_strided_slice %238 {offsets = [2, 0], sizes = [2, 128], strides = [1, 1]} : vector<4x128xf32> to vector<2x128xf32>
    %275 = vector.extract_strided_slice %274 {offsets = [0, 0], sizes = [2, 32], strides = [1, 1]} : vector<2x128xf32> to vector<2x32xf32>
    %276 = arith.negf %275 : vector<2x32xf32>
    %277 = math.exp %276 : vector<2x32xf32>
    %cst_45 = arith.constant 1.000000e+00 : f32
    %278 = vector.broadcast %cst_45 : f32 to vector<2x32xf32>
    %279 = arith.addf %278, %277 : vector<2x32xf32>
    %280 = arith.divf %278, %279 : vector<2x32xf32>
    %281 = vector.extract_strided_slice %274 {offsets = [0, 32], sizes = [2, 32], strides = [1, 1]} : vector<2x128xf32> to vector<2x32xf32>
    %282 = arith.negf %281 : vector<2x32xf32>
    %283 = math.exp %282 : vector<2x32xf32>
    %cst_46 = arith.constant 1.000000e+00 : f32
    %284 = vector.broadcast %cst_46 : f32 to vector<2x32xf32>
    %285 = arith.addf %284, %283 : vector<2x32xf32>
    %286 = arith.divf %284, %285 : vector<2x32xf32>
    %287 = vector.extract_strided_slice %274 {offsets = [0, 64], sizes = [2, 32], strides = [1, 1]} : vector<2x128xf32> to vector<2x32xf32>
    %288 = vector.extract_strided_slice %274 {offsets = [0, 96], sizes = [2, 32], strides = [1, 1]} : vector<2x128xf32> to vector<2x32xf32>
    %289 = arith.mulf %280, %288 : vector<2x32xf32>
    %290 = arith.addf %287, %289 : vector<2x32xf32>
    %291 = math.tanh %290 : vector<2x32xf32>
    %cst_47 = arith.constant 1.000000e+00 : f32
    %292 = vector.broadcast %cst_47 : f32 to vector<2x32xf32>
    %293 = arith.subf %292, %286 : vector<2x32xf32>
    %294 = arith.mulf %293, %291 : vector<2x32xf32>
    %295 = arith.mulf %286, %233 : vector<2x32xf32>
    %296 = arith.addf %294, %295 : vector<2x32xf32>
    %c5_i32 = arith.constant 5 : i32
    %297 = tpu.concatenate %273, %10, %10 in 1 : vector<2x32xf32>, vector<2x32xf32>, vector<2x32xf32> -> vector<2x96xf32>
    %298 = tpu.concatenate %10, %273, %296 in 1 : vector<2x32xf32>, vector<2x32xf32>, vector<2x32xf32> -> vector<2x96xf32>
    %299 = tpu.concatenate %297, %298 in 0 : vector<2x96xf32>, vector<2x96xf32> -> vector<4x96xf32>
    %cst_48 = arith.constant dense<0.000000e+00> : vector<4x128xf32>
    %300 = tpu.matmul %299, %0, %cst_48 {dimension_numbers = #tpu.dot_dimension_numbers<[1], [0], [0], [1], [0, 0, 1, 1], [], []>} : vector<4x96xf32>, vector<96x128xf32>, vector<4x128xf32> -> vector<4x128xf32>
    %301 = arith.addf %300, %7 : vector<4x128xf32>
    %302 = arith.index_cast %c5_i32 : i32 to index
    %c0_49 = arith.constant 0 : index
    %c0_50 = arith.constant 0 : index
    %303 = vector.load %arg1[%302, %c0_49, %c0_50] : memref<8x2x1xf32, #tpu.memory_space<vmem>>, vector<1x2x1xf32>
    %304 = vector.shape_cast %303 : vector<1x2x1xf32> to vector<2x1xf32>
    %305 = vector.broadcast %304 : vector<2x1xf32> to vector<2x96xf32>
    %306 = vector.broadcast %8 : vector<1x96xf32> to vector<2x96xf32>
    %307 = arith.mulf %305, %306 : vector<2x96xf32>
    %308 = vector.broadcast %9 : vector<1x96xf32> to vector<2x96xf32>
    %309 = arith.addf %307, %308 : vector<2x96xf32>
    %310 = vector.extract_strided_slice %301 {offsets = [0, 0], sizes = [2, 128], strides = [1, 1]} : vector<4x128xf32> to vector<2x128xf32>
    %311 = vector.extract_strided_slice %309 {offsets = [0, 0], sizes = [2, 32], strides = [1, 1]} : vector<2x96xf32> to vector<2x32xf32>
    %312 = vector.extract_strided_slice %310 {offsets = [0, 0], sizes = [2, 32], strides = [1, 1]} : vector<2x128xf32> to vector<2x32xf32>
    %313 = arith.addf %311, %312 : vector<2x32xf32>
    %314 = arith.negf %313 : vector<2x32xf32>
    %315 = math.exp %314 : vector<2x32xf32>
    %cst_51 = arith.constant 1.000000e+00 : f32
    %316 = vector.broadcast %cst_51 : f32 to vector<2x32xf32>
    %317 = arith.addf %316, %315 : vector<2x32xf32>
    %318 = arith.divf %316, %317 : vector<2x32xf32>
    %319 = vector.extract_strided_slice %309 {offsets = [0, 32], sizes = [2, 32], strides = [1, 1]} : vector<2x96xf32> to vector<2x32xf32>
    %320 = vector.extract_strided_slice %310 {offsets = [0, 32], sizes = [2, 32], strides = [1, 1]} : vector<2x128xf32> to vector<2x32xf32>
    %321 = arith.addf %319, %320 : vector<2x32xf32>
    %322 = arith.negf %321 : vector<2x32xf32>
    %323 = math.exp %322 : vector<2x32xf32>
    %cst_52 = arith.constant 1.000000e+00 : f32
    %324 = vector.broadcast %cst_52 : f32 to vector<2x32xf32>
    %325 = arith.addf %324, %323 : vector<2x32xf32>
    %326 = arith.divf %324, %325 : vector<2x32xf32>
    %327 = vector.extract_strided_slice %309 {offsets = [0, 64], sizes = [2, 32], strides = [1, 1]} : vector<2x96xf32> to vector<2x32xf32>
    %328 = vector.extract_strided_slice %310 {offsets = [0, 64], sizes = [2, 32], strides = [1, 1]} : vector<2x128xf32> to vector<2x32xf32>
    %329 = arith.mulf %318, %328 : vector<2x32xf32>
    %330 = arith.addf %327, %329 : vector<2x32xf32>
    %331 = math.tanh %330 : vector<2x32xf32>
    %cst_53 = arith.constant 1.000000e+00 : f32
    %332 = vector.broadcast %cst_53 : f32 to vector<2x32xf32>
    %333 = arith.subf %332, %326 : vector<2x32xf32>
    %334 = arith.mulf %333, %331 : vector<2x32xf32>
    %335 = arith.mulf %326, %273 : vector<2x32xf32>
    %336 = arith.addf %334, %335 : vector<2x32xf32>
    %337 = vector.extract_strided_slice %301 {offsets = [2, 0], sizes = [2, 128], strides = [1, 1]} : vector<4x128xf32> to vector<2x128xf32>
    %338 = vector.extract_strided_slice %337 {offsets = [0, 0], sizes = [2, 32], strides = [1, 1]} : vector<2x128xf32> to vector<2x32xf32>
    %339 = arith.negf %338 : vector<2x32xf32>
    %340 = math.exp %339 : vector<2x32xf32>
    %cst_54 = arith.constant 1.000000e+00 : f32
    %341 = vector.broadcast %cst_54 : f32 to vector<2x32xf32>
    %342 = arith.addf %341, %340 : vector<2x32xf32>
    %343 = arith.divf %341, %342 : vector<2x32xf32>
    %344 = vector.extract_strided_slice %337 {offsets = [0, 32], sizes = [2, 32], strides = [1, 1]} : vector<2x128xf32> to vector<2x32xf32>
    %345 = arith.negf %344 : vector<2x32xf32>
    %346 = math.exp %345 : vector<2x32xf32>
    %cst_55 = arith.constant 1.000000e+00 : f32
    %347 = vector.broadcast %cst_55 : f32 to vector<2x32xf32>
    %348 = arith.addf %347, %346 : vector<2x32xf32>
    %349 = arith.divf %347, %348 : vector<2x32xf32>
    %350 = vector.extract_strided_slice %337 {offsets = [0, 64], sizes = [2, 32], strides = [1, 1]} : vector<2x128xf32> to vector<2x32xf32>
    %351 = vector.extract_strided_slice %337 {offsets = [0, 96], sizes = [2, 32], strides = [1, 1]} : vector<2x128xf32> to vector<2x32xf32>
    %352 = arith.mulf %343, %351 : vector<2x32xf32>
    %353 = arith.addf %350, %352 : vector<2x32xf32>
    %354 = math.tanh %353 : vector<2x32xf32>
    %cst_56 = arith.constant 1.000000e+00 : f32
    %355 = vector.broadcast %cst_56 : f32 to vector<2x32xf32>
    %356 = arith.subf %355, %349 : vector<2x32xf32>
    %357 = arith.mulf %356, %354 : vector<2x32xf32>
    %358 = arith.mulf %349, %296 : vector<2x32xf32>
    %359 = arith.addf %357, %358 : vector<2x32xf32>
    %c6_i32 = arith.constant 6 : i32
    %360 = tpu.concatenate %336, %10, %10 in 1 : vector<2x32xf32>, vector<2x32xf32>, vector<2x32xf32> -> vector<2x96xf32>
    %361 = tpu.concatenate %10, %336, %359 in 1 : vector<2x32xf32>, vector<2x32xf32>, vector<2x32xf32> -> vector<2x96xf32>
    %362 = tpu.concatenate %360, %361 in 0 : vector<2x96xf32>, vector<2x96xf32> -> vector<4x96xf32>
    %cst_57 = arith.constant dense<0.000000e+00> : vector<4x128xf32>
    %363 = tpu.matmul %362, %0, %cst_57 {dimension_numbers = #tpu.dot_dimension_numbers<[1], [0], [0], [1], [0, 0, 1, 1], [], []>} : vector<4x96xf32>, vector<96x128xf32>, vector<4x128xf32> -> vector<4x128xf32>
    %364 = arith.addf %363, %7 : vector<4x128xf32>
    %365 = arith.index_cast %c6_i32 : i32 to index
    %c0_58 = arith.constant 0 : index
    %c0_59 = arith.constant 0 : index
    %366 = vector.load %arg1[%365, %c0_58, %c0_59] : memref<8x2x1xf32, #tpu.memory_space<vmem>>, vector<1x2x1xf32>
    %367 = vector.shape_cast %366 : vector<1x2x1xf32> to vector<2x1xf32>
    %368 = vector.broadcast %367 : vector<2x1xf32> to vector<2x96xf32>
    %369 = vector.broadcast %8 : vector<1x96xf32> to vector<2x96xf32>
    %370 = arith.mulf %368, %369 : vector<2x96xf32>
    %371 = vector.broadcast %9 : vector<1x96xf32> to vector<2x96xf32>
    %372 = arith.addf %370, %371 : vector<2x96xf32>
    %373 = vector.extract_strided_slice %364 {offsets = [0, 0], sizes = [2, 128], strides = [1, 1]} : vector<4x128xf32> to vector<2x128xf32>
    %374 = vector.extract_strided_slice %372 {offsets = [0, 0], sizes = [2, 32], strides = [1, 1]} : vector<2x96xf32> to vector<2x32xf32>
    %375 = vector.extract_strided_slice %373 {offsets = [0, 0], sizes = [2, 32], strides = [1, 1]} : vector<2x128xf32> to vector<2x32xf32>
    %376 = arith.addf %374, %375 : vector<2x32xf32>
    %377 = arith.negf %376 : vector<2x32xf32>
    %378 = math.exp %377 : vector<2x32xf32>
    %cst_60 = arith.constant 1.000000e+00 : f32
    %379 = vector.broadcast %cst_60 : f32 to vector<2x32xf32>
    %380 = arith.addf %379, %378 : vector<2x32xf32>
    %381 = arith.divf %379, %380 : vector<2x32xf32>
    %382 = vector.extract_strided_slice %372 {offsets = [0, 32], sizes = [2, 32], strides = [1, 1]} : vector<2x96xf32> to vector<2x32xf32>
    %383 = vector.extract_strided_slice %373 {offsets = [0, 32], sizes = [2, 32], strides = [1, 1]} : vector<2x128xf32> to vector<2x32xf32>
    %384 = arith.addf %382, %383 : vector<2x32xf32>
    %385 = arith.negf %384 : vector<2x32xf32>
    %386 = math.exp %385 : vector<2x32xf32>
    %cst_61 = arith.constant 1.000000e+00 : f32
    %387 = vector.broadcast %cst_61 : f32 to vector<2x32xf32>
    %388 = arith.addf %387, %386 : vector<2x32xf32>
    %389 = arith.divf %387, %388 : vector<2x32xf32>
    %390 = vector.extract_strided_slice %372 {offsets = [0, 64], sizes = [2, 32], strides = [1, 1]} : vector<2x96xf32> to vector<2x32xf32>
    %391 = vector.extract_strided_slice %373 {offsets = [0, 64], sizes = [2, 32], strides = [1, 1]} : vector<2x128xf32> to vector<2x32xf32>
    %392 = arith.mulf %381, %391 : vector<2x32xf32>
    %393 = arith.addf %390, %392 : vector<2x32xf32>
    %394 = math.tanh %393 : vector<2x32xf32>
    %cst_62 = arith.constant 1.000000e+00 : f32
    %395 = vector.broadcast %cst_62 : f32 to vector<2x32xf32>
    %396 = arith.subf %395, %389 : vector<2x32xf32>
    %397 = arith.mulf %396, %394 : vector<2x32xf32>
    %398 = arith.mulf %389, %336 : vector<2x32xf32>
    %399 = arith.addf %397, %398 : vector<2x32xf32>
    %400 = vector.extract_strided_slice %364 {offsets = [2, 0], sizes = [2, 128], strides = [1, 1]} : vector<4x128xf32> to vector<2x128xf32>
    %401 = vector.extract_strided_slice %400 {offsets = [0, 0], sizes = [2, 32], strides = [1, 1]} : vector<2x128xf32> to vector<2x32xf32>
    %402 = arith.negf %401 : vector<2x32xf32>
    %403 = math.exp %402 : vector<2x32xf32>
    %cst_63 = arith.constant 1.000000e+00 : f32
    %404 = vector.broadcast %cst_63 : f32 to vector<2x32xf32>
    %405 = arith.addf %404, %403 : vector<2x32xf32>
    %406 = arith.divf %404, %405 : vector<2x32xf32>
    %407 = vector.extract_strided_slice %400 {offsets = [0, 32], sizes = [2, 32], strides = [1, 1]} : vector<2x128xf32> to vector<2x32xf32>
    %408 = arith.negf %407 : vector<2x32xf32>
    %409 = math.exp %408 : vector<2x32xf32>
    %cst_64 = arith.constant 1.000000e+00 : f32
    %410 = vector.broadcast %cst_64 : f32 to vector<2x32xf32>
    %411 = arith.addf %410, %409 : vector<2x32xf32>
    %412 = arith.divf %410, %411 : vector<2x32xf32>
    %413 = vector.extract_strided_slice %400 {offsets = [0, 64], sizes = [2, 32], strides = [1, 1]} : vector<2x128xf32> to vector<2x32xf32>
    %414 = vector.extract_strided_slice %400 {offsets = [0, 96], sizes = [2, 32], strides = [1, 1]} : vector<2x128xf32> to vector<2x32xf32>
    %415 = arith.mulf %406, %414 : vector<2x32xf32>
    %416 = arith.addf %413, %415 : vector<2x32xf32>
    %417 = math.tanh %416 : vector<2x32xf32>
    %cst_65 = arith.constant 1.000000e+00 : f32
    %418 = vector.broadcast %cst_65 : f32 to vector<2x32xf32>
    %419 = arith.subf %418, %412 : vector<2x32xf32>
    %420 = arith.mulf %419, %417 : vector<2x32xf32>
    %421 = arith.mulf %412, %359 : vector<2x32xf32>
    %422 = arith.addf %420, %421 : vector<2x32xf32>
    %c7_i32 = arith.constant 7 : i32
    %423 = tpu.concatenate %399, %10, %10 in 1 : vector<2x32xf32>, vector<2x32xf32>, vector<2x32xf32> -> vector<2x96xf32>
    %424 = tpu.concatenate %10, %399, %422 in 1 : vector<2x32xf32>, vector<2x32xf32>, vector<2x32xf32> -> vector<2x96xf32>
    %425 = tpu.concatenate %423, %424 in 0 : vector<2x96xf32>, vector<2x96xf32> -> vector<4x96xf32>
    %cst_66 = arith.constant dense<0.000000e+00> : vector<4x128xf32>
    %426 = tpu.matmul %425, %0, %cst_66 {dimension_numbers = #tpu.dot_dimension_numbers<[1], [0], [0], [1], [0, 0, 1, 1], [], []>} : vector<4x96xf32>, vector<96x128xf32>, vector<4x128xf32> -> vector<4x128xf32>
    %427 = arith.addf %426, %7 : vector<4x128xf32>
    %428 = arith.index_cast %c7_i32 : i32 to index
    %c0_67 = arith.constant 0 : index
    %c0_68 = arith.constant 0 : index
    %429 = vector.load %arg1[%428, %c0_67, %c0_68] : memref<8x2x1xf32, #tpu.memory_space<vmem>>, vector<1x2x1xf32>
    %430 = vector.shape_cast %429 : vector<1x2x1xf32> to vector<2x1xf32>
    %431 = vector.broadcast %430 : vector<2x1xf32> to vector<2x96xf32>
    %432 = vector.broadcast %8 : vector<1x96xf32> to vector<2x96xf32>
    %433 = arith.mulf %431, %432 : vector<2x96xf32>
    %434 = vector.broadcast %9 : vector<1x96xf32> to vector<2x96xf32>
    %435 = arith.addf %433, %434 : vector<2x96xf32>
    %436 = vector.extract_strided_slice %427 {offsets = [0, 0], sizes = [2, 128], strides = [1, 1]} : vector<4x128xf32> to vector<2x128xf32>
    %437 = vector.extract_strided_slice %435 {offsets = [0, 0], sizes = [2, 32], strides = [1, 1]} : vector<2x96xf32> to vector<2x32xf32>
    %438 = vector.extract_strided_slice %436 {offsets = [0, 0], sizes = [2, 32], strides = [1, 1]} : vector<2x128xf32> to vector<2x32xf32>
    %439 = arith.addf %437, %438 : vector<2x32xf32>
    %440 = arith.negf %439 : vector<2x32xf32>
    %441 = math.exp %440 : vector<2x32xf32>
    %cst_69 = arith.constant 1.000000e+00 : f32
    %442 = vector.broadcast %cst_69 : f32 to vector<2x32xf32>
    %443 = arith.addf %442, %441 : vector<2x32xf32>
    %444 = arith.divf %442, %443 : vector<2x32xf32>
    %445 = vector.extract_strided_slice %435 {offsets = [0, 32], sizes = [2, 32], strides = [1, 1]} : vector<2x96xf32> to vector<2x32xf32>
    %446 = vector.extract_strided_slice %436 {offsets = [0, 32], sizes = [2, 32], strides = [1, 1]} : vector<2x128xf32> to vector<2x32xf32>
    %447 = arith.addf %445, %446 : vector<2x32xf32>
    %448 = arith.negf %447 : vector<2x32xf32>
    %449 = math.exp %448 : vector<2x32xf32>
    %cst_70 = arith.constant 1.000000e+00 : f32
    %450 = vector.broadcast %cst_70 : f32 to vector<2x32xf32>
    %451 = arith.addf %450, %449 : vector<2x32xf32>
    %452 = arith.divf %450, %451 : vector<2x32xf32>
    %453 = vector.extract_strided_slice %435 {offsets = [0, 64], sizes = [2, 32], strides = [1, 1]} : vector<2x96xf32> to vector<2x32xf32>
    %454 = vector.extract_strided_slice %436 {offsets = [0, 64], sizes = [2, 32], strides = [1, 1]} : vector<2x128xf32> to vector<2x32xf32>
    %455 = arith.mulf %444, %454 : vector<2x32xf32>
    %456 = arith.addf %453, %455 : vector<2x32xf32>
    %457 = math.tanh %456 : vector<2x32xf32>
    %cst_71 = arith.constant 1.000000e+00 : f32
    %458 = vector.broadcast %cst_71 : f32 to vector<2x32xf32>
    %459 = arith.subf %458, %452 : vector<2x32xf32>
    %460 = arith.mulf %459, %457 : vector<2x32xf32>
    %461 = arith.mulf %452, %399 : vector<2x32xf32>
    %462 = arith.addf %460, %461 : vector<2x32xf32>
    %463 = vector.extract_strided_slice %427 {offsets = [2, 0], sizes = [2, 128], strides = [1, 1]} : vector<4x128xf32> to vector<2x128xf32>
    %464 = vector.extract_strided_slice %463 {offsets = [0, 0], sizes = [2, 32], strides = [1, 1]} : vector<2x128xf32> to vector<2x32xf32>
    %465 = arith.negf %464 : vector<2x32xf32>
    %466 = math.exp %465 : vector<2x32xf32>
    %cst_72 = arith.constant 1.000000e+00 : f32
    %467 = vector.broadcast %cst_72 : f32 to vector<2x32xf32>
    %468 = arith.addf %467, %466 : vector<2x32xf32>
    %469 = arith.divf %467, %468 : vector<2x32xf32>
    %470 = vector.extract_strided_slice %463 {offsets = [0, 32], sizes = [2, 32], strides = [1, 1]} : vector<2x128xf32> to vector<2x32xf32>
    %471 = arith.negf %470 : vector<2x32xf32>
    %472 = math.exp %471 : vector<2x32xf32>
    %cst_73 = arith.constant 1.000000e+00 : f32
    %473 = vector.broadcast %cst_73 : f32 to vector<2x32xf32>
    %474 = arith.addf %473, %472 : vector<2x32xf32>
    %475 = arith.divf %473, %474 : vector<2x32xf32>
    %476 = vector.extract_strided_slice %463 {offsets = [0, 64], sizes = [2, 32], strides = [1, 1]} : vector<2x128xf32> to vector<2x32xf32>
    %477 = vector.extract_strided_slice %463 {offsets = [0, 96], sizes = [2, 32], strides = [1, 1]} : vector<2x128xf32> to vector<2x32xf32>
    %478 = arith.mulf %469, %477 : vector<2x32xf32>
    %479 = arith.addf %476, %478 : vector<2x32xf32>
    %480 = math.tanh %479 : vector<2x32xf32>
    %cst_74 = arith.constant 1.000000e+00 : f32
    %481 = vector.broadcast %cst_74 : f32 to vector<2x32xf32>
    %482 = arith.subf %481, %475 : vector<2x32xf32>
    %483 = arith.mulf %482, %480 : vector<2x32xf32>
    %484 = arith.mulf %475, %422 : vector<2x32xf32>
    %485 = arith.addf %483, %484 : vector<2x32xf32>
    %c7_i32_75 = arith.constant 7 : i32
    %486 = tpu.concatenate %462, %485 in 1 : vector<2x32xf32>, vector<2x32xf32> -> vector<2x64xf32>
    %487 = vector.extract_strided_slice %0 {offsets = [32, 0], sizes = [64, 128], strides = [1, 1]} : vector<96x128xf32> to vector<64x128xf32>
    %cst_76 = arith.constant dense<0.000000e+00> : vector<2x128xf32>
    %488 = tpu.matmul %486, %487, %cst_76 {dimension_numbers = #tpu.dot_dimension_numbers<[1], [0], [0], [1], [0, 0, 1, 1], [], []>} : vector<2x64xf32>, vector<64x128xf32>, vector<2x128xf32> -> vector<2x128xf32>
    %489 = vector.extract_strided_slice %7 {offsets = [2, 0], sizes = [2, 128], strides = [1, 1]} : vector<4x128xf32> to vector<2x128xf32>
    %490 = arith.addf %488, %489 : vector<2x128xf32>
    %491 = vector.extract_strided_slice %490 {offsets = [0, 0], sizes = [2, 32], strides = [1, 1]} : vector<2x128xf32> to vector<2x32xf32>
    %492 = arith.negf %491 : vector<2x32xf32>
    %493 = math.exp %492 : vector<2x32xf32>
    %cst_77 = arith.constant 1.000000e+00 : f32
    %494 = vector.broadcast %cst_77 : f32 to vector<2x32xf32>
    %495 = arith.addf %494, %493 : vector<2x32xf32>
    %496 = arith.divf %494, %495 : vector<2x32xf32>
    %497 = vector.extract_strided_slice %490 {offsets = [0, 32], sizes = [2, 32], strides = [1, 1]} : vector<2x128xf32> to vector<2x32xf32>
    %498 = arith.negf %497 : vector<2x32xf32>
    %499 = math.exp %498 : vector<2x32xf32>
    %cst_78 = arith.constant 1.000000e+00 : f32
    %500 = vector.broadcast %cst_78 : f32 to vector<2x32xf32>
    %501 = arith.addf %500, %499 : vector<2x32xf32>
    %502 = arith.divf %500, %501 : vector<2x32xf32>
    %503 = vector.extract_strided_slice %490 {offsets = [0, 64], sizes = [2, 32], strides = [1, 1]} : vector<2x128xf32> to vector<2x32xf32>
    %504 = vector.extract_strided_slice %490 {offsets = [0, 96], sizes = [2, 32], strides = [1, 1]} : vector<2x128xf32> to vector<2x32xf32>
    %505 = arith.mulf %496, %504 : vector<2x32xf32>
    %506 = arith.addf %503, %505 : vector<2x32xf32>
    %507 = math.tanh %506 : vector<2x32xf32>
    %cst_79 = arith.constant 1.000000e+00 : f32
    %508 = vector.broadcast %cst_79 : f32 to vector<2x32xf32>
    %509 = arith.subf %508, %502 : vector<2x32xf32>
    %510 = arith.mulf %509, %507 : vector<2x32xf32>
    %511 = arith.mulf %502, %485 : vector<2x32xf32>
    %512 = arith.addf %510, %511 : vector<2x32xf32>
    %c4 = arith.constant 4 : index
    %c0_80 = arith.constant 0 : index
    %513 = vector.load %arg3[%c4, %c0_80] : memref<8x128xf32, #tpu.memory_space<vmem>>, vector<1x32xf32>
    %c5 = arith.constant 5 : index
    %c0_81 = arith.constant 0 : index
    %514 = vector.load %arg3[%c5, %c0_81] : memref<8x128xf32, #tpu.memory_space<vmem>>, vector<1x1xf32>
    %515 = vector.broadcast %513 : vector<1x32xf32> to vector<2x32xf32>
    %516 = arith.mulf %512, %515 : vector<2x32xf32>
    %cst_82 = arith.constant dense<0.000000e+00> : vector<2xf32>
    %517 = vector.multi_reduction <add>, %516, %cst_82 [1] : vector<2x32xf32> to vector<2xf32>
    %518 = vector.shape_cast %517 : vector<2xf32> to vector<2x1xf32>
    %519 = vector.broadcast %514 : vector<1x1xf32> to vector<2x1xf32>
    %520 = arith.addf %518, %519 : vector<2x1xf32>
    %c0_83 = arith.constant 0 : index
    %c0_84 = arith.constant 0 : index
    %521 = vector.load %arg4[%c0_83, %c0_84] : memref<2x1xf32, #tpu.memory_space<vmem>>, vector<2x1xf32>
    tpu.vector_store %arg4[%c0_83, %c0_84], %520 {strides = array<i32>} : memref<2x1xf32, #tpu.memory_space<vmem>>, vector<2x1xf32>,
    return
  }
  func.func @transform_0(%arg0: i32) -> (i32, i32, i32) {
    %c0_i32 = arith.constant 0 : i32
    %c0_i32_0 = arith.constant 0 : i32
    %c0_i32_1 = arith.constant 0 : i32
    %c0_i32_2 = arith.constant 0 : i32
    return %c0_i32, %c0_i32_0, %c0_i32_1 : i32, i32, i32
  }
  func.func @transform_1(%arg0: i32) -> (i32, i32) {
    %c0_i32 = arith.constant 0 : i32
    %c0_i32_0 = arith.constant 0 : i32
    %c0_i32_1 = arith.constant 0 : i32
    return %c0_i32, %c0_i32_0 : i32, i32
  }
  func.func @transform_2(%arg0: i32) -> (i32, i32) {
    %c0_i32 = arith.constant 0 : i32
    %c0_i32_0 = arith.constant 0 : i32
    %c0_i32_1 = arith.constant 0 : i32
    return %c0_i32, %c0_i32_0 : i32, i32
  }
  func.func @transform_3(%arg0: i32) -> (i32, i32) {
    %c0_i32 = arith.constant 0 : i32
    %c0_i32_0 = arith.constant 0 : i32
    %c0_i32_1 = arith.constant 0 : i32
    return %c0_i32, %c0_i32_0 : i32, i32
  }
}

</mosaic_0001>

<llo_original>
// kernel: gru_forward.1
$region0: #{gru_forward.1}
  #allocation0 [shape = 'u32[]', space=smem, size = 0x4, offset = 0x4, fixed_abs, tag = 'smem constant byte address 0x4 - core index']
  #allocation1 [shape = 'u32[144,128]{1,0:T(1,128)}', space=vmem, size = 0x12000, scoped, tag = 'internal scratch']
  %s0 = inlined_call_operand.vmem [shape: f32[8,2,1], index: 0, kind: input, shape index: {}]
  %s1 = inlined_call_operand.hbm [shape: f32[96,128], index: 1, kind: input, shape index: {}]
  %s2 = inlined_call_operand.vmem [shape: f32[8,128], index: 2, kind: input, shape index: {}]
  %s3 = inlined_call_operand.vmem [shape: f32[2,1], index: 3, kind: output, shape index: {}]
  %s4 = sld [smem:[#allocation0]]
  $region26: #{gru_forward.1} parent=0
    _
  %s6 = ssub.s32 1, %s4
  %s7 = scalar_select 0, %s6, %s4
  $region1: #{gru_forward.1} parent=0
    #allocation2 [shape = 'u8[49152]{0}', space=vmem, size = 0xc000, scoped, tag = 'input window, operand 1, single buffered']
    #allocation3 [shape = 's32[1]{0}', space=sflag, size = 0x4, scoped, tag = 'scoped memory for gru_forward.1']
    %8 = vsyncpa [#allocation3], 0
    // Predicated region
    $region2: #{gru_forward.1} parent=1 // pred_check
      _
    $region3: #{gru_forward.1} parent=1 // pred_check_branch
      %10 = sbr.rel (0) target = $region5
    $region4: #{gru_forward.1} parent=1 // pred_region
      _
    $region5: #{gru_forward.1} parent=1 // pred_fallthru
      _
    // Predicated region
    $region6: #{gru_forward.1} parent=1 // pred_check
      _
    $region7: #{gru_forward.1} parent=1 // pred_check_branch
      %12 = sbr.rel (0) target = $region9
    $region8: #{gru_forward.1} parent=1 // pred_region
      %s14 = ssub.s32 1536, 1536
      %15 = vsyncadd [#allocation3], %s14
      %s16 = sshll.u32 [#allocation2], 4
      %s17 = int_to_ptr.vmem [resolvable:$true] %s16
      %22 = dma.hbm_to_vmem [thread:$0]  %s1, 1536, %s17, [#allocation3], 128, 128, 8
    $region9: #{gru_forward.1} parent=1 // pred_fallthru
      _
    // Predicated region
    $region10: #{gru_forward.1} parent=1 // pred_check
      _
    $region11: #{gru_forward.1} parent=1 // pred_check_branch
      %24 = sbr.rel (0) target = $region13
    $region12: #{gru_forward.1} parent=1 // pred_region
      _
    $region13: #{gru_forward.1} parent=1 // pred_fallthru
      _
    // Predicated region
    $region14: #{gru_forward.1} parent=1 // pred_check
      _
    $region15: #{gru_forward.1} parent=1 // pred_check_branch
      %26 = sbr.rel (0) target = $region17
    $region16: #{gru_forward.1} parent=1 // pred_region
      %27 = dma.done [#allocation3], 1536
    $region17: #{gru_forward.1} parent=1 // pred_fallthru
      _
    %v28 = vld [vmem:[#allocation2] sm:$0xff]
    %v29 = vld [vmem:[#allocation2 + $0x8] sm:$0xff]
    %v30 = vld [vmem:[#allocation2 + $0x10] sm:$0xff]
    %v31 = vld [vmem:[#allocation2 + $0x18] sm:$0xff]
    %v32 = vld [vmem:[#allocation2 + $0x20] sm:$0xff]
    %v33 = vld [vmem:[#allocation2 + $0x28] sm:$0xff]
    %v34 = vld [vmem:[#allocation2 + $0x30] sm:$0xff]
    %v35 = vld [vmem:[#allocation2 + $0x38] sm:$0xff]
    %v36 = vld [vmem:[#allocation2 + $0x40] sm:$0xff]
    %v37 = vld [vmem:[#allocation2 + $0x48] sm:$0xff]
    %v38 = vld [vmem:[#allocation2 + $0x50] sm:$0xff]
    %v39 = vld [vmem:[#allocation2 + $0x58] sm:$0xff]
    %v40 = vld [vmem:[%s2] sm:$0x1]
    %v41 = vld [vmem:[%s2 + $0x1] sm:$0x1]
    %v42 = vlaneseq
    %v43 = vshrl.u32 %v42, 7
    %v44 = vsub.s32 0, %v43
    %v45 = vrot.slane %v40, %v44
    %v46 = vlaneseq
    %v47 = vshrl.u32 %v46, 7
    %v48 = vsub.s32 0, %v47
    %v49 = vrot.slane %v41, %v48
    %vm50 = vcmask 1041408
    %v51 = vsel %vm50, %v45, %v49
    %v52 = vld [vmem:[%s2 + $0x2] sm:$0x1]
    %v53 = vld [vmem:[%s2 + $0x3] sm:$0x1]
    %v54 = vld [vmem:[%s0] sm:$0x3]
    %56 = vset.pattern.permute.xlu0 0
    %57 = vperm.xlu0 %56, %v54
    %v58 = vpop.permute.xlu0 %57
    %v60 = vlaneseq
    %v61 = vshrl.u32 %v60, 7
    %v62 = vsub.s32 0, %v61
    %v63 = vrot.slane %v52, %v62
    %v64 = vmul.f32 %v58, %v63
    %v65 = vlaneseq
    %v66 = vshrl.u32 %v65, 7
    %v67 = vsub.s32 0, %v66
    %v68 = vrot.slane %v53, %v67
    %v69 = vadd.f32 %v64, %v68
    %v70 = vadd.f32 %v69, %v51
    %v71 = vxor.u32 %v70, 2147483648
    %v72 = vmul.f32 %v71, 1.442695
    %v73 = vpow.pop %v72
    %v74 = vadd.f32 %v73, 1.0
    %v75 = vrcp.pop %v74
    %v76 = vmul.f32 1.0, %v75
    %78 = vrot.lane.b32.xlu0 %v51, 64
    %v79 = vpop.permute.xlu0 %78
    %v81 = vmul.f32 %v76, %v79
    %83 = vrot.lane.b32.xlu0 %v81, 64
    %v84 = vpop.permute.xlu0 %83
    %v86 = vadd.f32 %v69, %v84
    %v87 = vtanh.pop %v86
    %v88 = vsub.f32 1.0, %v76
    %90 = vrot.lane.b32.xlu0 %v87, 96
    %v91 = vpop.permute.xlu0 %90
    %v93 = vmul.f32 %v88, %v91
    %v94 = vmul.f32 %v76, 0.0
    %v95 = vadd.f32 %v93, %v94
    %97 = vrot.lane.b32.xlu0 %v95, 96
    %v98 = vpop.permute.xlu0 %97
    %vm100 = vcmask 261120
    %v101 = vsel %vm100, %v98, 0.0
    %vm102 = vcmask 523264
    %v103 = vsel %vm102, %v101, 0.0
    %v104 = vsel %vm100, 0.0, %v95
    %v105 = vsel %vm102, %v104, 0.0
    %v107 = vrot.slane %v105, 6
    %v109 = vsel %vm50, %v103, %v107
    %vm110 = vcmask 785408
    %v112 = vsel %vm110, %v109, 0
    %114 = vmatprep.subr.mxu0 0.0
    %115 = vmatpush1.msra.mxu0 0.0
    %116 = vmatprep.subr.mxu0 0.0
    %117 = vmatpush1.msra.mxu0 0.0
    %118 = vmatprep.subr.mxu0 0.0
    %119 = vmatpush1.msra.mxu0 0.0
    %120 = vmatprep.subr.mxu0 0.0
    %121 = vmatpush1.msra.mxu0 0.0
    %122 = vmatprep.subr.mxu0 0.0
    %123 = vmatpush1.msra.mxu0 %v39
    %124 = vmatprep.subr.mxu0 0.0
    %125 = vmatpush1.msra.mxu0 %v38
    %126 = vmatprep.subr.mxu0 0.0
    %127 = vmatpush1.msra.mxu0 %v37
    %128 = vmatprep.subr.mxu0 0.0
    %129 = vmatpush1.msra.mxu0 %v36
    %130 = vmatprep.subr.mxu0 0.0
    %131 = vmatpush1.msra.mxu0 %v35
    %132 = vmatprep.subr.mxu0 0.0
    %133 = vmatpush1.msra.mxu0 %v34
    %134 = vmatprep.subr.mxu0 0.0
    %135 = vmatpush1.msra.mxu0 %v33
    %136 = vmatprep.subr.mxu0 0.0
    %137 = vmatpush1.msra.mxu0 %v32
    %138 = vmatprep.subr.mxu0 0.0
    %139 = vmatpush1.msra.mxu0 %v31
    %140 = vmatprep.subr.mxu0 0.0
    %141 = vmatpush1.msra.mxu0 %v30
    %142 = vmatprep.subr.mxu0 0.0
    %143 = vmatpush1.msra.mxu0 %v29
    %144 = vmatprep.subr.mxu0 0.0
    %145 = vmatpush1.msra.mxu0 %v28
    %146 = vmatprep.subr.mxu0 0.0
    %147 = vmatpush2.msra.mxu0 0.0
    %148 = vmatprep.subr.mxu0 0.0
    %149 = vmatpush2.msra.mxu0 0.0
    %150 = vmatprep.subr.mxu0 0.0
    %151 = vmatpush2.msra.mxu0 0.0
    %152 = vmatprep.subr.mxu0 0.0
    %153 = vmatpush2.msra.mxu0 0.0
    %154 = vmatprep.subr.mxu0 0.0
    %155 = vmatpush2.msra.mxu0 0.0
    %156 = vmatprep.subr.mxu0 0.0
    %157 = vmatpush2.msra.mxu0 0.0
    %158 = vmatprep.subr.mxu0 0.0
    %159 = vmatpush2.msra.mxu0 0.0
    %160 = vmatprep.subr.mxu0 0.0
    %161 = vmatpush2.msra.mxu0 0.0
    %162 = vmatprep.subr.mxu0 0.0
    %163 = vmatpush2.msra.mxu0 0.0
    %164 = vmatprep.subr.mxu0 0.0
    %165 = vmatpush2.msra.mxu0 0.0
    %166 = vmatprep.subr.mxu0 0.0
    %167 = vmatpush2.msra.mxu0 0.0
    %168 = vmatprep.subr.mxu0 0.0
    %169 = vmatpush2.msra.mxu0 0.0
    %170 = vmatprep.subr.mxu0 0.0
    %171 = vmatpush2.msra.mxu0 0.0
    %172 = vmatprep.subr.mxu0 0.0
    %173 = vmatpush2.msra.mxu0 0.0
    %174 = vmatprep.subr.mxu0 0.0
    %175 = vmatpush2.msra.mxu0 0.0
    %176 = vmatprep.subr.mxu0 0.0
    %177 = vmatpush2.msra.mxu0 0.0
    %178 = vmatprep.mubr.f32.mxu0 0.0
    %179 = vmatmul.mubr.f32.gmra.mxu0 %v112
    %v180 = vpop.f32.mrf.mxu0
    %v181 = vadd.f32 %v51, %v180
    %v182 = vpop.f32.mrf.mxu0
    %183 = vdwg.mxu0
    %s184 = scalar_lea.vmem %s0, 2
    %v185 = vld [vmem:[%s184] sm:$0x3]
    %187 = vset.pattern.permute.xlu0 0
    %188 = vperm.xlu0 %187, %v185
    %v189 = vpop.permute.xlu0 %188
    %v191 = vmul.f32 %v189, %v63
    %v192 = vadd.f32 %v191, %v68
    %v193 = vadd.f32 %v192, %v181
    %v194 = vxor.u32 %v193, 2147483648
    %v195 = vmul.f32 %v194, 1.442695
    %v196 = vpow.pop %v195
    %v197 = vadd.f32 %v196, 1.0
    %v198 = vrcp.pop %v197
    %v199 = vmul.f32 1.0, %v198
    %201 = vrot.lane.b32.xlu0 %v181, 64
    %v202 = vpop.permute.xlu0 %201
    %v204 = vmul.f32 %v199, %v202
    %206 = vrot.lane.b32.xlu0 %v204, 64
    %v207 = vpop.permute.xlu0 %206
    %v209 = vadd.f32 %v192, %v207
    %v210 = vtanh.pop %v209
    %v211 = vsub.f32 1.0, %v199
    %213 = vrot.lane.b32.xlu0 %v210, 96
    %v214 = vpop.permute.xlu0 %213
    %v216 = vmul.f32 %v211, %v214
    %v217 = vmul.f32 %v199, %v95
    %v218 = vadd.f32 %v216, %v217
    %v219 = vxor.u32 %v181, 2147483648
    %v220 = vmul.f32 %v219, 1.442695
    %v221 = vpow.pop %v220
    %v222 = vadd.f32 %v221, 1.0
    %v223 = vrcp.pop %v222
    %v224 = vmul.f32 1.0, %v223
    %225 = vrot.lane.b32.xlu0 %v181, 32
    %v226 = vpop.permute.xlu0 %225
    %v228 = vmul.f32 %v224, %v226
    %230 = vrot.lane.b32.xlu0 %v228, 64
    %v231 = vpop.permute.xlu0 %230
    %v233 = vadd.f32 %v181, %v231
    %v234 = vtanh.pop %v233
    %v235 = vsub.f32 1.0, %v224
    %237 = vrot.lane.b32.xlu0 %v234, 96
    %v238 = vpop.permute.xlu0 %237
    %v240 = vmul.f32 %v235, %v238
    %v241 = vmul.f32 %v224, 0.0
    %v242 = vadd.f32 %v240, %v241
    %244 = vrot.lane.b32.xlu0 %v218, 96
    %v245 = vpop.permute.xlu0 %244
    %v247 = vsel %vm100, %v245, 0.0
    %v248 = vsel %vm102, %v247, 0.0
    %v250 = vrot.slane %v242, 2
    %251 = vrot.lane.b32.xlu0 %v250, 32
    %v252 = vpop.permute.xlu0 %251
    %v254 = vsel %vm100, 0.0, %v218
    %v255 = vsel %vm102, %v254, %v252
    %v257 = vrot.slane %v255, 6
    %v259 = vsel %vm50, %v248, %v257
    %v261 = vsel %vm110, %v259, 0
    %263 = vmatprep.subr.mxu0 0.0
    %264 = vmatpush1.msra.mxu0 0.0
    %265 = vmatprep.subr.mxu0 0.0
    %266 = vmatpush1.msra.mxu0 0.0
    %267 = vmatprep.subr.mxu0 0.0
    %268 = vmatpush1.msra.mxu0 0.0
    %269 = vmatprep.subr.mxu0 0.0
    %270 = vmatpush1.msra.mxu0 0.0
    %271 = vmatprep.subr.mxu0 0.0
    %272 = vmatpush1.msra.mxu0 %v39
    %273 = vmatprep.subr.mxu0 0.0
    %274 = vmatpush1.msra.mxu0 %v38
    %275 = vmatprep.subr.mxu0 0.0
    %276 = vmatpush1.msra.mxu0 %v37
    %277 = vmatprep.subr.mxu0 0.0
    %278 = vmatpush1.msra.mxu0 %v36
    %279 = vmatprep.subr.mxu0 0.0
    %280 = vmatpush1.msra.mxu0 %v35
    %281 = vmatprep.subr.mxu0 0.0
    %282 = vmatpush1.msra.mxu0 %v34
    %283 = vmatprep.subr.mxu0 0.0
    %284 = vmatpush1.msra.mxu0 %v33
    %285 = vmatprep.subr.mxu0 0.0
    %286 = vmatpush1.msra.mxu0 %v32
    %287 = vmatprep.subr.mxu0 0.0
    %288 = vmatpush1.msra.mxu0 %v31
    %289 = vmatprep.subr.mxu0 0.0
    %290 = vmatpush1.msra.mxu0 %v30
    %291 = vmatprep.subr.mxu0 0.0
    %292 = vmatpush1.msra.mxu0 %v29
    %293 = vmatprep.subr.mxu0 0.0
    %294 = vmatpush1.msra.mxu0 %v28
    %295 = vmatprep.subr.mxu0 0.0
    %296 = vmatpush2.msra.mxu0 0.0
    %297 = vmatprep.subr.mxu0 0.0
    %298 = vmatpush2.msra.mxu0 0.0
    %299 = vmatprep.subr.mxu0 0.0
    %300 = vmatpush2.msra.mxu0 0.0
    %301 = vmatprep.subr.mxu0 0.0
    %302 = vmatpush2.msra.mxu0 0.0
    %303 = vmatprep.subr.mxu0 0.0
    %304 = vmatpush2.msra.mxu0 0.0
    %305 = vmatprep.subr.mxu0 0.0
    %306 = vmatpush2.msra.mxu0 0.0
    %307 = vmatprep.subr.mxu0 0.0
    %308 = vmatpush2.msra.mxu0 0.0
    %309 = vmatprep.subr.mxu0 0.0
    %310 = vmatpush2.msra.mxu0 0.0
    %311 = vmatprep.subr.mxu0 0.0
    %312 = vmatpush2.msra.mxu0 0.0
    %313 = vmatprep.subr.mxu0 0.0
    %314 = vmatpush2.msra.mxu0 0.0
    %315 = vmatprep.subr.mxu0 0.0
    %316 = vmatpush2.msra.mxu0 0.0
    %317 = vmatprep.subr.mxu0 0.0
    %318 = vmatpush2.msra.mxu0 0.0
    %319 = vmatprep.subr.mxu0 0.0
    %320 = vmatpush2.msra.mxu0 0.0
    %321 = vmatprep.subr.mxu0 0.0
    %322 = vmatpush2.msra.mxu0 0.0
    %323 = vmatprep.subr.mxu0 0.0
    %324 = vmatpush2.msra.mxu0 0.0
    %325 = vmatprep.subr.mxu0 0.0
    %326 = vmatpush2.msra.mxu0 0.0
    %327 = vmatprep.mubr.f32.mxu0 0.0
    %328 = vmatmul.mubr.f32.gmra.mxu0 %v261
    %v329 = vpop.f32.mrf.mxu0
    %v330 = vadd.f32 %v51, %v329
    %v331 = vpop.f32.mrf.mxu0
    %332 = vdwg.mxu0
    %s333 = scalar_lea.vmem %s0, 4
    %v334 = vld [vmem:[%s333] sm:$0x3]
    %336 = vset.pattern.permute.xlu0 0
    %337 = vperm.xlu0 %336, %v334
    %v338 = vpop.permute.xlu0 %337
    %v340 = vmul.f32 %v338, %v63
    %v341 = vadd.f32 %v340, %v68
    %v342 = vadd.f32 %v341, %v330
    %v343 = vxor.u32 %v342, 2147483648
    %v344 = vmul.f32 %v343, 1.442695
    %v345 = vpow.pop %v344
    %v346 = vadd.f32 %v345, 1.0
    %v347 = vrcp.pop %v346
    %v348 = vmul.f32 1.0, %v347
    %350 = vrot.lane.b32.xlu0 %v330, 64
    %v351 = vpop.permute.xlu0 %350
    %v353 = vmul.f32 %v348, %v351
    %355 = vrot.lane.b32.xlu0 %v353, 64
    %v356 = vpop.permute.xlu0 %355
    %v358 = vadd.f32 %v341, %v356
    %v359 = vtanh.pop %v358
    %v360 = vsub.f32 1.0, %v348
    %362 = vrot.lane.b32.xlu0 %v359, 96
    %v363 = vpop.permute.xlu0 %362
    %v365 = vmul.f32 %v360, %v363
    %v366 = vmul.f32 %v348, %v218
    %v367 = vadd.f32 %v365, %v366
    %v368 = vxor.u32 %v330, 2147483648
    %v369 = vmul.f32 %v368, 1.442695
    %v370 = vpow.pop %v369
    %v371 = vadd.f32 %v370, 1.0
    %v372 = vrcp.pop %v371
    %v373 = vmul.f32 1.0, %v372
    %374 = vrot.lane.b32.xlu0 %v330, 32
    %v375 = vpop.permute.xlu0 %374
    %v377 = vmul.f32 %v373, %v375
    %379 = vrot.lane.b32.xlu0 %v377, 64
    %v380 = vpop.permute.xlu0 %379
    %v382 = vadd.f32 %v330, %v380
    %v383 = vtanh.pop %v382
    %v384 = vsub.f32 1.0, %v373
    %386 = vrot.lane.b32.xlu0 %v383, 96
    %v387 = vpop.permute.xlu0 %386
    %v389 = vmul.f32 %v384, %v387
    %v390 = vmul.f32 %v373, %v242
    %v391 = vadd.f32 %v389, %v390
    %393 = vrot.lane.b32.xlu0 %v367, 96
    %v394 = vpop.permute.xlu0 %393
    %v396 = vsel %vm100, %v394, 0.0
    %v397 = vsel %vm102, %v396, 0.0
    %v399 = vrot.slane %v391, 2
    %400 = vrot.lane.b32.xlu0 %v399, 32
    %v401 = vpop.permute.xlu0 %400
    %v403 = vsel %vm100, 0.0, %v367
    %v404 = vsel %vm102, %v403, %v401
    %v406 = vrot.slane %v404, 6
    %v408 = vsel %vm50, %v397, %v406
    %v410 = vsel %vm110, %v408, 0
    %412 = vmatprep.subr.mxu0 0.0
    %413 = vmatpush1.msra.mxu0 0.0
    %414 = vmatprep.subr.mxu0 0.0
    %415 = vmatpush1.msra.mxu0 0.0
    %416 = vmatprep.subr.mxu0 0.0
    %417 = vmatpush1.msra.mxu0 0.0
    %418 = vmatprep.subr.mxu0 0.0
    %419 = vmatpush1.msra.mxu0 0.0
    %420 = vmatprep.subr.mxu0 0.0
    %421 = vmatpush1.msra.mxu0 %v39
    %422 = vmatprep.subr.mxu0 0.0
    %423 = vmatpush1.msra.mxu0 %v38
    %424 = vmatprep.subr.mxu0 0.0
    %425 = vmatpush1.msra.mxu0 %v37
    %426 = vmatprep.subr.mxu0 0.0
    %427 = vmatpush1.msra.mxu0 %v36
    %428 = vmatprep.subr.mxu0 0.0
    %429 = vmatpush1.msra.mxu0 %v35
    %430 = vmatprep.subr.mxu0 0.0
    %431 = vmatpush1.msra.mxu0 %v34
    %432 = vmatprep.subr.mxu0 0.0
    %433 = vmatpush1.msra.mxu0 %v33
    %434 = vmatprep.subr.mxu0 0.0
    %435 = vmatpush1.msra.mxu0 %v32
    %436 = vmatprep.subr.mxu0 0.0
    %437 = vmatpush1.msra.mxu0 %v31
    %438 = vmatprep.subr.mxu0 0.0
    %439 = vmatpush1.msra.mxu0 %v30
    %440 = vmatprep.subr.mxu0 0.0
    %441 = vmatpush1.msra.mxu0 %v29
    %442 = vmatprep.subr.mxu0 0.0
    %443 = vmatpush1.msra.mxu0 %v28
    %444 = vmatprep.subr.mxu0 0.0
    %445 = vmatpush2.msra.mxu0 0.0
    %446 = vmatprep.subr.mxu0 0.0
    %447 = vmatpush2.msra.mxu0 0.0
    %448 = vmatprep.subr.mxu0 0.0
    %449 = vmatpush2.msra.mxu0 0.0
    %450 = vmatprep.subr.mxu0 0.0
    %451 = vmatpush2.msra.mxu0 0.0
    %452 = vmatprep.subr.mxu0 0.0
    %453 = vmatpush2.msra.mxu0 0.0
    %454 = vmatprep.subr.mxu0 0.0
    %455 = vmatpush2.msra.mxu0 0.0
    %456 = vmatprep.subr.mxu0 0.0
    %457 = vmatpush2.msra.mxu0 0.0
    %458 = vmatprep.subr.mxu0 0.0
    %459 = vmatpush2.msra.mxu0 0.0
    %460 = vmatprep.subr.mxu0 0.0
    %461 = vmatpush2.msra.mxu0 0.0
    %462 = vmatprep.subr.mxu0 0.0
    %463 = vmatpush2.msra.mxu0 0.0
    %464 = vmatprep.subr.mxu0 0.0
    %465 = vmatpush2.msra.mxu0 0.0
    %466 = vmatprep.subr.mxu0 0.0
    %467 = vmatpush2.msra.mxu0 0.0
    %468 = vmatprep.subr.mxu0 0.0
    %469 = vmatpush2.msra.mxu0 0.0
    %470 = vmatprep.subr.mxu0 0.0
    %471 = vmatpush2.msra.mxu0 0.0
    %472 = vmatprep.subr.mxu0 0.0
    %473 = vmatpush2.msra.mxu0 0.0
    %474 = vmatprep.subr.mxu0 0.0
    %475 = vmatpush2.msra.mxu0 0.0
    %476 = vmatprep.mubr.f32.mxu0 0.0
    %477 = vmatmul.mubr.f32.gmra.mxu0 %v410
    %v478 = vpop.f32.mrf.mxu0
    %v479 = vadd.f32 %v51, %v478
    %v480 = vpop.f32.mrf.mxu0
    %481 = vdwg.mxu0
    %s482 = scalar_lea.vmem %s0, 6
    %v483 = vld [vmem:[%s482] sm:$0x3]
    %485 = vset.pattern.permute.xlu0 0
    %486 = vperm.xlu0 %485, %v483
    %v487 = vpop.permute.xlu0 %486
    %v489 = vmul.f32 %v487, %v63
    %v490 = vadd.f32 %v489, %v68
    %v491 = vadd.f32 %v490, %v479
    %v492 = vxor.u32 %v491, 2147483648
    %v493 = vmul.f32 %v492, 1.442695
    %v494 = vpow.pop %v493
    %v495 = vadd.f32 %v494, 1.0
    %v496 = vrcp.pop %v495
    %v497 = vmul.f32 1.0, %v496
    %499 = vrot.lane.b32.xlu0 %v479, 64
    %v500 = vpop.permute.xlu0 %499
    %v502 = vmul.f32 %v497, %v500
    %504 = vrot.lane.b32.xlu0 %v502, 64
    %v505 = vpop.permute.xlu0 %504
    %v507 = vadd.f32 %v490, %v505
    %v508 = vtanh.pop %v507
    %v509 = vsub.f32 1.0, %v497
    %511 = vrot.lane.b32.xlu0 %v508, 96
    %v512 = vpop.permute.xlu0 %511
    %v514 = vmul.f32 %v509, %v512
    %v515 = vmul.f32 %v497, %v367
    %v516 = vadd.f32 %v514, %v515
    %v517 = vxor.u32 %v479, 2147483648
    %v518 = vmul.f32 %v517, 1.442695
    %v519 = vpow.pop %v518
    %v520 = vadd.f32 %v519, 1.0
    %v521 = vrcp.pop %v520
    %v522 = vmul.f32 1.0, %v521
    %523 = vrot.lane.b32.xlu0 %v479, 32
    %v524 = vpop.permute.xlu0 %523
    %v526 = vmul.f32 %v522, %v524
    %528 = vrot.lane.b32.xlu0 %v526, 64
    %v529 = vpop.permute.xlu0 %528
    %v531 = vadd.f32 %v479, %v529
    %v532 = vtanh.pop %v531
    %v533 = vsub.f32 1.0, %v522
    %535 = vrot.lane.b32.xlu0 %v532, 96
    %v536 = vpop.permute.xlu0 %535
    %v538 = vmul.f32 %v533, %v536
    %v539 = vmul.f32 %v522, %v391
    %v540 = vadd.f32 %v538, %v539
    %542 = vrot.lane.b32.xlu0 %v516, 96
    %v543 = vpop.permute.xlu0 %542
    %v545 = vsel %vm100, %v543, 0.0
    %v546 = vsel %vm102, %v545, 0.0
    %v548 = vrot.slane %v540, 2
    %549 = vrot.lane.b32.xlu0 %v548, 32
    %v550 = vpop.permute.xlu0 %549
    %v552 = vsel %vm100, 0.0, %v516
    %v553 = vsel %vm102, %v552, %v550
    %v555 = vrot.slane %v553, 6
    %v557 = vsel %vm50, %v546, %v555
    %v559 = vsel %vm110, %v557, 0
    %561 = vmatprep.subr.mxu0 0.0
    %562 = vmatpush1.msra.mxu0 0.0
    %563 = vmatprep.subr.mxu0 0.0
    %564 = vmatpush1.msra.mxu0 0.0
    %565 = vmatprep.subr.mxu0 0.0
    %566 = vmatpush1.msra.mxu0 0.0
    %567 = vmatprep.subr.mxu0 0.0
    %568 = vmatpush1.msra.mxu0 0.0
    %569 = vmatprep.subr.mxu0 0.0
    %570 = vmatpush1.msra.mxu0 %v39
    %571 = vmatprep.subr.mxu0 0.0
    %572 = vmatpush1.msra.mxu0 %v38
    %573 = vmatprep.subr.mxu0 0.0
    %574 = vmatpush1.msra.mxu0 %v37
    %575 = vmatprep.subr.mxu0 0.0
    %576 = vmatpush1.msra.mxu0 %v36
    %577 = vmatprep.subr.mxu0 0.0
    %578 = vmatpush1.msra.mxu0 %v35
    %579 = vmatprep.subr.mxu0 0.0
    %580 = vmatpush1.msra.mxu0 %v34
    %581 = vmatprep.subr.mxu0 0.0
    %582 = vmatpush1.msra.mxu0 %v33
    %583 = vmatprep.subr.mxu0 0.0
    %584 = vmatpush1.msra.mxu0 %v32
    %585 = vmatprep.subr.mxu0 0.0
    %586 = vmatpush1.msra.mxu0 %v31
    %587 = vmatprep.subr.mxu0 0.0
    %588 = vmatpush1.msra.mxu0 %v30
    %589 = vmatprep.subr.mxu0 0.0
    %590 = vmatpush1.msra.mxu0 %v29
    %591 = vmatprep.subr.mxu0 0.0
    %592 = vmatpush1.msra.mxu0 %v28
    %593 = vmatprep.subr.mxu0 0.0
    %594 = vmatpush2.msra.mxu0 0.0
    %595 = vmatprep.subr.mxu0 0.0
    %596 = vmatpush2.msra.mxu0 0.0
    %597 = vmatprep.subr.mxu0 0.0
    %598 = vmatpush2.msra.mxu0 0.0
    %599 = vmatprep.subr.mxu0 0.0
    %600 = vmatpush2.msra.mxu0 0.0
    %601 = vmatprep.subr.mxu0 0.0
    %602 = vmatpush2.msra.mxu0 0.0
    %603 = vmatprep.subr.mxu0 0.0
    %604 = vmatpush2.msra.mxu0 0.0
    %605 = vmatprep.subr.mxu0 0.0
    %606 = vmatpush2.msra.mxu0 0.0
    %607 = vmatprep.subr.mxu0 0.0
    %608 = vmatpush2.msra.mxu0 0.0
    %609 = vmatprep.subr.mxu0 0.0
    %610 = vmatpush2.msra.mxu0 0.0
    %611 = vmatprep.subr.mxu0 0.0
    %612 = vmatpush2.msra.mxu0 0.0
    %613 = vmatprep.subr.mxu0 0.0
    %614 = vmatpush2.msra.mxu0 0.0
    %615 = vmatprep.subr.mxu0 0.0
    %616 = vmatpush2.msra.mxu0 0.0
    %617 = vmatprep.subr.mxu0 0.0
    %618 = vmatpush2.msra.mxu0 0.0
    %619 = vmatprep.subr.mxu0 0.0
    %620 = vmatpush2.msra.mxu0 0.0
    %621 = vmatprep.subr.mxu0 0.0
    %622 = vmatpush2.msra.mxu0 0.0
    %623 = vmatprep.subr.mxu0 0.0
    %624 = vmatpush2.msra.mxu0 0.0
    %625 = vmatprep.mubr.f32.mxu0 0.0
    %626 = vmatmul.mubr.f32.gmra.mxu0 %v559
    %v627 = vpop.f32.mrf.mxu0
    %v628 = vadd.f32 %v51, %v627
    %v629 = vpop.f32.mrf.mxu0
    %630 = vdwg.mxu0
    %s631 = scalar_lea.vmem %s0, 8
    %v632 = vld [vmem:[%s631] sm:$0x3]
    %634 = vset.pattern.permute.xlu0 0
    %635 = vperm.xlu0 %634, %v632
    %v636 = vpop.permute.xlu0 %635
    %v638 = vmul.f32 %v636, %v63
    %v639 = vadd.f32 %v638, %v68
    %v640 = vadd.f32 %v639, %v628
    %v641 = vxor.u32 %v640, 2147483648
    %v642 = vmul.f32 %v641, 1.442695
    %v643 = vpow.pop %v642
    %v644 = vadd.f32 %v643, 1.0
    %v645 = vrcp.pop %v644
    %v646 = vmul.f32 1.0, %v645
    %648 = vrot.lane.b32.xlu0 %v628, 64
    %v649 = vpop.permute.xlu0 %648
    %v651 = vmul.f32 %v646, %v649
    %653 = vrot.lane.b32.xlu0 %v651, 64
    %v654 = vpop.permute.xlu0 %653
    %v656 = vadd.f32 %v639, %v654
    %v657 = vtanh.pop %v656
    %v658 = vsub.f32 1.0, %v646
    %660 = vrot.lane.b32.xlu0 %v657, 96
    %v661 = vpop.permute.xlu0 %660
    %v663 = vmul.f32 %v658, %v661
    %v664 = vmul.f32 %v646, %v516
    %v665 = vadd.f32 %v663, %v664
    %v666 = vxor.u32 %v628, 2147483648
    %v667 = vmul.f32 %v666, 1.442695
    %v668 = vpow.pop %v667
    %v669 = vadd.f32 %v668, 1.0
    %v670 = vrcp.pop %v669
    %v671 = vmul.f32 1.0, %v670
    %672 = vrot.lane.b32.xlu0 %v628, 32
    %v673 = vpop.permute.xlu0 %672
    %v675 = vmul.f32 %v671, %v673
    %677 = vrot.lane.b32.xlu0 %v675, 64
    %v678 = vpop.permute.xlu0 %677
    %v680 = vadd.f32 %v628, %v678
    %v681 = vtanh.pop %v680
    %v682 = vsub.f32 1.0, %v671
    %684 = vrot.lane.b32.xlu0 %v681, 96
    %v685 = vpop.permute.xlu0 %684
    %v687 = vmul.f32 %v682, %v685
    %v688 = vmul.f32 %v671, %v540
    %v689 = vadd.f32 %v687, %v688
    %691 = vrot.lane.b32.xlu0 %v665, 96
    %v692 = vpop.permute.xlu0 %691
    %v694 = vsel %vm100, %v692, 0.0
    %v695 = vsel %vm102, %v694, 0.0
    %v697 = vrot.slane %v689, 2
    %698 = vrot.lane.b32.xlu0 %v697, 32
    %v699 = vpop.permute.xlu0 %698
    %v701 = vsel %vm100, 0.0, %v665
    %v702 = vsel %vm102, %v701, %v699
    %v704 = vrot.slane %v702, 6
    %v706 = vsel %vm50, %v695, %v704
    %v708 = vsel %vm110, %v706, 0
    %710 = vmatprep.subr.mxu0 0.0
    %711 = vmatpush1.msra.mxu0 0.0
    %712 = vmatprep.subr.mxu0 0.0
    %713 = vmatpush1.msra.mxu0 0.0
    %714 = vmatprep.subr.mxu0 0.0
    %715 = vmatpush1.msra.mxu0 0.0
    %716 = vmatprep.subr.mxu0 0.0
    %717 = vmatpush1.msra.mxu0 0.0
    %718 = vmatprep.subr.mxu0 0.0
    %719 = vmatpush1.msra.mxu0 %v39
    %720 = vmatprep.subr.mxu0 0.0
    %721 = vmatpush1.msra.mxu0 %v38
    %722 = vmatprep.subr.mxu0 0.0
    %723 = vmatpush1.msra.mxu0 %v37
    %724 = vmatprep.subr.mxu0 0.0
    %725 = vmatpush1.msra.mxu0 %v36
    %726 = vmatprep.subr.mxu0 0.0
    %727 = vmatpush1.msra.mxu0 %v35
    %728 = vmatprep.subr.mxu0 0.0
    %729 = vmatpush1.msra.mxu0 %v34
    %730 = vmatprep.subr.mxu0 0.0
    %731 = vmatpush1.msra.mxu0 %v33
    %732 = vmatprep.subr.mxu0 0.0
    %733 = vmatpush1.msra.mxu0 %v32
    %734 = vmatprep.subr.mxu0 0.0
    %735 = vmatpush1.msra.mxu0 %v31
    %736 = vmatprep.subr.mxu0 0.0
    %737 = vmatpush1.msra.mxu0 %v30
    %738 = vmatprep.subr.mxu0 0.0
    %739 = vmatpush1.msra.mxu0 %v29
    %740 = vmatprep.subr.mxu0 0.0
    %741 = vmatpush1.msra.mxu0 %v28
    %742 = vmatprep.subr.mxu0 0.0
    %743 = vmatpush2.msra.mxu0 0.0
    %744 = vmatprep.subr.mxu0 0.0
    %745 = vmatpush2.msra.mxu0 0.0
    %746 = vmatprep.subr.mxu0 0.0
    %747 = vmatpush2.msra.mxu0 0.0
    %748 = vmatprep.subr.mxu0 0.0
    %749 = vmatpush2.msra.mxu0 0.0
    %750 = vmatprep.subr.mxu0 0.0
    %751 = vmatpush2.msra.mxu0 0.0
    %752 = vmatprep.subr.mxu0 0.0
    %753 = vmatpush2.msra.mxu0 0.0
    %754 = vmatprep.subr.mxu0 0.0
    %755 = vmatpush2.msra.mxu0 0.0
    %756 = vmatprep.subr.mxu0 0.0
    %757 = vmatpush2.msra.mxu0 0.0
    %758 = vmatprep.subr.mxu0 0.0
    %759 = vmatpush2.msra.mxu0 0.0
    %760 = vmatprep.subr.mxu0 0.0
    %761 = vmatpush2.msra.mxu0 0.0
    %762 = vmatprep.subr.mxu0 0.0
    %763 = vmatpush2.msra.mxu0 0.0
    %764 = vmatprep.subr.mxu0 0.0
    %765 = vmatpush2.msra.mxu0 0.0
    %766 = vmatprep.subr.mxu0 0.0
    %767 = vmatpush2.msra.mxu0 0.0
    %768 = vmatprep.subr.mxu0 0.0
    %769 = vmatpush2.msra.mxu0 0.0
    %770 = vmatprep.subr.mxu0 0.0
    %771 = vmatpush2.msra.mxu0 0.0
    %772 = vmatprep.subr.mxu0 0.0
    %773 = vmatpush2.msra.mxu0 0.0
    %774 = vmatprep.mubr.f32.mxu0 0.0
    %775 = vmatmul.mubr.f32.gmra.mxu0 %v708
    %v776 = vpop.f32.mrf.mxu0
    %v777 = vadd.f32 %v51, %v776
    %v778 = vpop.f32.mrf.mxu0
    %779 = vdwg.mxu0
    %s780 = scalar_lea.vmem %s0, 10
    %v781 = vld [vmem:[%s780] sm:$0x3]
    %783 = vset.pattern.permute.xlu0 0
    %784 = vperm.xlu0 %783, %v781
    %v785 = vpop.permute.xlu0 %784
    %v787 = vmul.f32 %v785, %v63
    %v788 = vadd.f32 %v787, %v68
    %v789 = vadd.f32 %v788, %v777
    %v790 = vxor.u32 %v789, 2147483648
    %v791 = vmul.f32 %v790, 1.442695
    %v792 = vpow.pop %v791
    %v793 = vadd.f32 %v792, 1.0
    %v794 = vrcp.pop %v793
    %v795 = vmul.f32 1.0, %v794
    %797 = vrot.lane.b32.xlu0 %v777, 64
    %v798 = vpop.permute.xlu0 %797
    %v800 = vmul.f32 %v795, %v798
    %802 = vrot.lane.b32.xlu0 %v800, 64
    %v803 = vpop.permute.xlu0 %802
    %v805 = vadd.f32 %v788, %v803
    %v806 = vtanh.pop %v805
    %v807 = vsub.f32 1.0, %v795
    %809 = vrot.lane.b32.xlu0 %v806, 96
    %v810 = vpop.permute.xlu0 %809
    %v812 = vmul.f32 %v807, %v810
    %v813 = vmul.f32 %v795, %v665
    %v814 = vadd.f32 %v812, %v813
    %v815 = vxor.u32 %v777, 2147483648
    %v816 = vmul.f32 %v815, 1.442695
    %v817 = vpow.pop %v816
    %v818 = vadd.f32 %v817, 1.0
    %v819 = vrcp.pop %v818
    %v820 = vmul.f32 1.0, %v819
    %821 = vrot.lane.b32.xlu0 %v777, 32
    %v822 = vpop.permute.xlu0 %821
    %v824 = vmul.f32 %v820, %v822
    %826 = vrot.lane.b32.xlu0 %v824, 64
    %v827 = vpop.permute.xlu0 %826
    %v829 = vadd.f32 %v777, %v827
    %v830 = vtanh.pop %v829
    %v831 = vsub.f32 1.0, %v820
    %833 = vrot.lane.b32.xlu0 %v830, 96
    %v834 = vpop.permute.xlu0 %833
    %v836 = vmul.f32 %v831, %v834
    %v837 = vmul.f32 %v820, %v689
    %v838 = vadd.f32 %v836, %v837
    %840 = vrot.lane.b32.xlu0 %v814, 96
    %v841 = vpop.permute.xlu0 %840
    %v843 = vsel %vm100, %v841, 0.0
    %v844 = vsel %vm102, %v843, 0.0
    %v846 = vrot.slane %v838, 2
    %847 = vrot.lane.b32.xlu0 %v846, 32
    %v848 = vpop.permute.xlu0 %847
    %v850 = vsel %vm100, 0.0, %v814
    %v851 = vsel %vm102, %v850, %v848
    %v853 = vrot.slane %v851, 6
    %v855 = vsel %vm50, %v844, %v853
    %v857 = vsel %vm110, %v855, 0
    %859 = vmatprep.subr.mxu0 0.0
    %860 = vmatpush1.msra.mxu0 0.0
    %861 = vmatprep.subr.mxu0 0.0
    %862 = vmatpush1.msra.mxu0 0.0
    %863 = vmatprep.subr.mxu0 0.0
    %864 = vmatpush1.msra.mxu0 0.0
    %865 = vmatprep.subr.mxu0 0.0
    %866 = vmatpush1.msra.mxu0 0.0
    %867 = vmatprep.subr.mxu0 0.0
    %868 = vmatpush1.msra.mxu0 %v39
    %869 = vmatprep.subr.mxu0 0.0
    %870 = vmatpush1.msra.mxu0 %v38
    %871 = vmatprep.subr.mxu0 0.0
    %872 = vmatpush1.msra.mxu0 %v37
    %873 = vmatprep.subr.mxu0 0.0
    %874 = vmatpush1.msra.mxu0 %v36
    %875 = vmatprep.subr.mxu0 0.0
    %876 = vmatpush1.msra.mxu0 %v35
    %877 = vmatprep.subr.mxu0 0.0
    %878 = vmatpush1.msra.mxu0 %v34
    %879 = vmatprep.subr.mxu0 0.0
    %880 = vmatpush1.msra.mxu0 %v33
    %881 = vmatprep.subr.mxu0 0.0
    %882 = vmatpush1.msra.mxu0 %v32
    %883 = vmatprep.subr.mxu0 0.0
    %884 = vmatpush1.msra.mxu0 %v31
    %885 = vmatprep.subr.mxu0 0.0
    %886 = vmatpush1.msra.mxu0 %v30
    %887 = vmatprep.subr.mxu0 0.0
    %888 = vmatpush1.msra.mxu0 %v29
    %889 = vmatprep.subr.mxu0 0.0
    %890 = vmatpush1.msra.mxu0 %v28
    %891 = vmatprep.subr.mxu0 0.0
    %892 = vmatpush2.msra.mxu0 0.0
    %893 = vmatprep.subr.mxu0 0.0
    %894 = vmatpush2.msra.mxu0 0.0
    %895 = vmatprep.subr.mxu0 0.0
    %896 = vmatpush2.msra.mxu0 0.0
    %897 = vmatprep.subr.mxu0 0.0
    %898 = vmatpush2.msra.mxu0 0.0
    %899 = vmatprep.subr.mxu0 0.0
    %900 = vmatpush2.msra.mxu0 0.0
    %901 = vmatprep.subr.mxu0 0.0
    %902 = vmatpush2.msra.mxu0 0.0
    %903 = vmatprep.subr.mxu0 0.0
    %904 = vmatpush2.msra.mxu0 0.0
    %905 = vmatprep.subr.mxu0 0.0
    %906 = vmatpush2.msra.mxu0 0.0
    %907 = vmatprep.subr.mxu0 0.0
    %908 = vmatpush2.msra.mxu0 0.0
    %909 = vmatprep.subr.mxu0 0.0
    %910 = vmatpush2.msra.mxu0 0.0
    %911 = vmatprep.subr.mxu0 0.0
    %912 = vmatpush2.msra.mxu0 0.0
    %913 = vmatprep.subr.mxu0 0.0
    %914 = vmatpush2.msra.mxu0 0.0
    %915 = vmatprep.subr.mxu0 0.0
    %916 = vmatpush2.msra.mxu0 0.0
    %917 = vmatprep.subr.mxu0 0.0
    %918 = vmatpush2.msra.mxu0 0.0
    %919 = vmatprep.subr.mxu0 0.0
    %920 = vmatpush2.msra.mxu0 0.0
    %921 = vmatprep.subr.mxu0 0.0
    %922 = vmatpush2.msra.mxu0 0.0
    %923 = vmatprep.mubr.f32.mxu0 0.0
    %924 = vmatmul.mubr.f32.gmra.mxu0 %v857
    %v925 = vpop.f32.mrf.mxu0
    %v926 = vadd.f32 %v51, %v925
    %v927 = vpop.f32.mrf.mxu0
    %928 = vdwg.mxu0
    %s929 = scalar_lea.vmem %s0, 12
    %v930 = vld [vmem:[%s929] sm:$0x3]
    %932 = vset.pattern.permute.xlu0 0
    %933 = vperm.xlu0 %932, %v930
    %v934 = vpop.permute.xlu0 %933
    %v936 = vmul.f32 %v934, %v63
    %v937 = vadd.f32 %v936, %v68
    %v938 = vadd.f32 %v937, %v926
    %v939 = vxor.u32 %v938, 2147483648
    %v940 = vmul.f32 %v939, 1.442695
    %v941 = vpow.pop %v940
    %v942 = vadd.f32 %v941, 1.0
    %v943 = vrcp.pop %v942
    %v944 = vmul.f32 1.0, %v943
    %946 = vrot.lane.b32.xlu0 %v926, 64
    %v947 = vpop.permute.xlu0 %946
    %v949 = vmul.f32 %v944, %v947
    %951 = vrot.lane.b32.xlu0 %v949, 64
    %v952 = vpop.permute.xlu0 %951
    %v954 = vadd.f32 %v937, %v952
    %v955 = vtanh.pop %v954
    %v956 = vsub.f32 1.0, %v944
    %958 = vrot.lane.b32.xlu0 %v955, 96
    %v959 = vpop.permute.xlu0 %958
    %v961 = vmul.f32 %v956, %v959
    %v962 = vmul.f32 %v944, %v814
    %v963 = vadd.f32 %v961, %v962
    %v964 = vxor.u32 %v926, 2147483648
    %v965 = vmul.f32 %v964, 1.442695
    %v966 = vpow.pop %v965
    %v967 = vadd.f32 %v966, 1.0
    %v968 = vrcp.pop %v967
    %v969 = vmul.f32 1.0, %v968
    %970 = vrot.lane.b32.xlu0 %v926, 32
    %v971 = vpop.permute.xlu0 %970
    %v973 = vmul.f32 %v969, %v971
    %975 = vrot.lane.b32.xlu0 %v973, 64
    %v976 = vpop.permute.xlu0 %975
    %v978 = vadd.f32 %v926, %v976
    %v979 = vtanh.pop %v978
    %v980 = vsub.f32 1.0, %v969
    %982 = vrot.lane.b32.xlu0 %v979, 96
    %v983 = vpop.permute.xlu0 %982
    %v985 = vmul.f32 %v980, %v983
    %v986 = vmul.f32 %v969, %v838
    %v987 = vadd.f32 %v985, %v986
    %989 = vrot.lane.b32.xlu0 %v963, 96
    %v990 = vpop.permute.xlu0 %989
    %v992 = vsel %vm100, %v990, 0.0
    %v993 = vsel %vm102, %v992, 0.0
    %v995 = vrot.slane %v987, 2
    %996 = vrot.lane.b32.xlu0 %v995, 32
    %v997 = vpop.permute.xlu0 %996
    %v999 = vsel %vm100, 0.0, %v963
    %v1000 = vsel %vm102, %v999, %v997
    %v1002 = vrot.slane %v1000, 6
    %v1004 = vsel %vm50, %v993, %v1002
    %v1006 = vsel %vm110, %v1004, 0
    %1008 = vmatprep.subr.mxu0 0.0
    %1009 = vmatpush1.msra.mxu0 0.0
    %1010 = vmatprep.subr.mxu0 0.0
    %1011 = vmatpush1.msra.mxu0 0.0
    %1012 = vmatprep.subr.mxu0 0.0
    %1013 = vmatpush1.msra.mxu0 0.0
    %1014 = vmatprep.subr.mxu0 0.0
    %1015 = vmatpush1.msra.mxu0 0.0
    %1016 = vmatprep.subr.mxu0 0.0
    %1017 = vmatpush1.msra.mxu0 %v39
    %1018 = vmatprep.subr.mxu0 0.0
    %1019 = vmatpush1.msra.mxu0 %v38
    %1020 = vmatprep.subr.mxu0 0.0
    %1021 = vmatpush1.msra.mxu0 %v37
    %1022 = vmatprep.subr.mxu0 0.0
    %1023 = vmatpush1.msra.mxu0 %v36
    %1024 = vmatprep.subr.mxu0 0.0
    %1025 = vmatpush1.msra.mxu0 %v35
    %1026 = vmatprep.subr.mxu0 0.0
    %1027 = vmatpush1.msra.mxu0 %v34
    %1028 = vmatprep.subr.mxu0 0.0
    %1029 = vmatpush1.msra.mxu0 %v33
    %1030 = vmatprep.subr.mxu0 0.0
    %1031 = vmatpush1.msra.mxu0 %v32
    %1032 = vmatprep.subr.mxu0 0.0
    %1033 = vmatpush1.msra.mxu0 %v31
    %1034 = vmatprep.subr.mxu0 0.0
    %1035 = vmatpush1.msra.mxu0 %v30
    %1036 = vmatprep.subr.mxu0 0.0
    %1037 = vmatpush1.msra.mxu0 %v29
    %1038 = vmatprep.subr.mxu0 0.0
    %1039 = vmatpush1.msra.mxu0 %v28
    %1040 = vmatprep.subr.mxu0 0.0
    %1041 = vmatpush2.msra.mxu0 0.0
    %1042 = vmatprep.subr.mxu0 0.0
    %1043 = vmatpush2.msra.mxu0 0.0
    %1044 = vmatprep.subr.mxu0 0.0
    %1045 = vmatpush2.msra.mxu0 0.0
    %1046 = vmatprep.subr.mxu0 0.0
    %1047 = vmatpush2.msra.mxu0 0.0
    %1048 = vmatprep.subr.mxu0 0.0
    %1049 = vmatpush2.msra.mxu0 0.0
    %1050 = vmatprep.subr.mxu0 0.0
    %1051 = vmatpush2.msra.mxu0 0.0
    %1052 = vmatprep.subr.mxu0 0.0
    %1053 = vmatpush2.msra.mxu0 0.0
    %1054 = vmatprep.subr.mxu0 0.0
    %1055 = vmatpush2.msra.mxu0 0.0
    %1056 = vmatprep.subr.mxu0 0.0
    %1057 = vmatpush2.msra.mxu0 0.0
    %1058 = vmatprep.subr.mxu0 0.0
    %1059 = vmatpush2.msra.mxu0 0.0
    %1060 = vmatprep.subr.mxu0 0.0
    %1061 = vmatpush2.msra.mxu0 0.0
    %1062 = vmatprep.subr.mxu0 0.0
    %1063 = vmatpush2.msra.mxu0 0.0
    %1064 = vmatprep.subr.mxu0 0.0
    %1065 = vmatpush2.msra.mxu0 0.0
    %1066 = vmatprep.subr.mxu0 0.0
    %1067 = vmatpush2.msra.mxu0 0.0
    %1068 = vmatprep.subr.mxu0 0.0
    %1069 = vmatpush2.msra.mxu0 0.0
    %1070 = vmatprep.subr.mxu0 0.0
    %1071 = vmatpush2.msra.mxu0 0.0
    %1072 = vmatprep.mubr.f32.mxu0 0.0
    %1073 = vmatmul.mubr.f32.gmra.mxu0 %v1006
    %v1074 = vpop.f32.mrf.mxu0
    %v1075 = vadd.f32 %v51, %v1074
    %v1076 = vpop.f32.mrf.mxu0
    %1077 = vdwg.mxu0
    %s1078 = scalar_lea.vmem %s0, 14
    %v1079 = vld [vmem:[%s1078] sm:$0x3]
    %1081 = vset.pattern.permute.xlu0 0
    %1082 = vperm.xlu0 %1081, %v1079
    %v1083 = vpop.permute.xlu0 %1082
    %v1085 = vmul.f32 %v1083, %v63
    %v1086 = vadd.f32 %v1085, %v68
    %v1087 = vadd.f32 %v1086, %v1075
    %v1088 = vxor.u32 %v1087, 2147483648
    %v1089 = vmul.f32 %v1088, 1.442695
    %v1090 = vpow.pop %v1089
    %v1091 = vadd.f32 %v1090, 1.0
    %v1092 = vrcp.pop %v1091
    %v1093 = vmul.f32 1.0, %v1092
    %1095 = vrot.lane.b32.xlu0 %v1075, 64
    %v1096 = vpop.permute.xlu0 %1095
    %v1098 = vmul.f32 %v1093, %v1096
    %1100 = vrot.lane.b32.xlu0 %v1098, 64
    %v1101 = vpop.permute.xlu0 %1100
    %v1103 = vadd.f32 %v1086, %v1101
    %v1104 = vtanh.pop %v1103
    %v1105 = vsub.f32 1.0, %v1093
    %1107 = vrot.lane.b32.xlu0 %v1104, 96
    %v1108 = vpop.permute.xlu0 %1107
    %v1110 = vmul.f32 %v1105, %v1108
    %v1111 = vmul.f32 %v1093, %v963
    %v1112 = vadd.f32 %v1110, %v1111
    %v1113 = vxor.u32 %v1075, 2147483648
    %v1114 = vmul.f32 %v1113, 1.442695
    %v1115 = vpow.pop %v1114
    %v1116 = vadd.f32 %v1115, 1.0
    %v1117 = vrcp.pop %v1116
    %v1118 = vmul.f32 1.0, %v1117
    %1119 = vrot.lane.b32.xlu0 %v1075, 32
    %v1120 = vpop.permute.xlu0 %1119
    %v1122 = vmul.f32 %v1118, %v1120
    %1124 = vrot.lane.b32.xlu0 %v1122, 64
    %v1125 = vpop.permute.xlu0 %1124
    %v1127 = vadd.f32 %v1075, %v1125
    %v1128 = vtanh.pop %v1127
    %v1129 = vsub.f32 1.0, %v1118
    %1131 = vrot.lane.b32.xlu0 %v1128, 96
    %v1132 = vpop.permute.xlu0 %1131
    %v1134 = vmul.f32 %v1129, %v1132
    %v1135 = vmul.f32 %v1118, %v987
    %v1136 = vadd.f32 %v1134, %v1135
    %1138 = vrot.lane.b32.xlu0 %v1112, 96
    %v1139 = vpop.permute.xlu0 %1138
    %v1142 = vrot.slane %v1136, 2
    %v1144 = vsel %vm100, %v1139, %v1142
    %v1145 = vrot.slane %v51, 2
    %v1148 = vsel %vm102, %v1144, 0
    %1150 = vmatprep.subr.mxu0 0.0
    %1151 = vmatpush1.msra.mxu0 0.0
    %1152 = vmatprep.subr.mxu0 0.0
    %1153 = vmatpush1.msra.mxu0 0.0
    %1154 = vmatprep.subr.mxu0 0.0
    %1155 = vmatpush1.msra.mxu0 0.0
    %1156 = vmatprep.subr.mxu0 0.0
    %1157 = vmatpush1.msra.mxu0 0.0
    %1158 = vmatprep.subr.mxu0 0.0
    %1159 = vmatpush1.msra.mxu0 0.0
    %1160 = vmatprep.subr.mxu0 0.0
    %1161 = vmatpush1.msra.mxu0 0.0
    %1162 = vmatprep.subr.mxu0 0.0
    %1163 = vmatpush1.msra.mxu0 0.0
    %1164 = vmatprep.subr.mxu0 0.0
    %1165 = vmatpush1.msra.mxu0 0.0
    %1166 = vmatprep.subr.mxu0 0.0
    %1167 = vmatpush1.msra.mxu0 %v39
    %1168 = vmatprep.subr.mxu0 0.0
    %1169 = vmatpush1.msra.mxu0 %v38
    %1170 = vmatprep.subr.mxu0 0.0
    %1171 = vmatpush1.msra.mxu0 %v37
    %1172 = vmatprep.subr.mxu0 0.0
    %1173 = vmatpush1.msra.mxu0 %v36
    %1174 = vmatprep.subr.mxu0 0.0
    %1175 = vmatpush1.msra.mxu0 %v35
    %1176 = vmatprep.subr.mxu0 0.0
    %1177 = vmatpush1.msra.mxu0 %v34
    %1178 = vmatprep.subr.mxu0 0.0
    %1179 = vmatpush1.msra.mxu0 %v33
    %1180 = vmatprep.subr.mxu0 0.0
    %1181 = vmatpush1.msra.mxu0 %v32
    %1182 = vmatprep.subr.mxu0 0.0
    %1183 = vmatpush2.msra.mxu0 0.0
    %1184 = vmatprep.subr.mxu0 0.0
    %1185 = vmatpush2.msra.mxu0 0.0
    %1186 = vmatprep.subr.mxu0 0.0
    %1187 = vmatpush2.msra.mxu0 0.0
    %1188 = vmatprep.subr.mxu0 0.0
    %1189 = vmatpush2.msra.mxu0 0.0
    %1190 = vmatprep.subr.mxu0 0.0
    %1191 = vmatpush2.msra.mxu0 0.0
    %1192 = vmatprep.subr.mxu0 0.0
    %1193 = vmatpush2.msra.mxu0 0.0
    %1194 = vmatprep.subr.mxu0 0.0
    %1195 = vmatpush2.msra.mxu0 0.0
    %1196 = vmatprep.subr.mxu0 0.0
    %1197 = vmatpush2.msra.mxu0 0.0
    %1198 = vmatprep.subr.mxu0 0.0
    %1199 = vmatpush2.msra.mxu0 0.0
    %1200 = vmatprep.subr.mxu0 0.0
    %1201 = vmatpush2.msra.mxu0 0.0
    %1202 = vmatprep.subr.mxu0 0.0
    %1203 = vmatpush2.msra.mxu0 0.0
    %1204 = vmatprep.subr.mxu0 0.0
    %1205 = vmatpush2.msra.mxu0 0.0
    %1206 = vmatprep.subr.mxu0 0.0
    %1207 = vmatpush2.msra.mxu0 0.0
    %1208 = vmatprep.subr.mxu0 0.0
    %1209 = vmatpush2.msra.mxu0 0.0
    %1210 = vmatprep.subr.mxu0 0.0
    %1211 = vmatpush2.msra.mxu0 0.0
    %1212 = vmatprep.subr.mxu0 0.0
    %1213 = vmatpush2.msra.mxu0 0.0
    %1214 = vmatprep.mubr.f32.mxu0 0.0
    %1215 = vmatmul.mubr.f32.gmra.mxu0 %v1148
    %v1216 = vpop.f32.mrf.mxu0
    %v1217 = vadd.f32 %v1145, %v1216
    %v1218 = vpop.f32.mrf.mxu0
    %1219 = vdwg.mxu0
    %v1220 = vxor.u32 %v1217, 2147483648
    %v1221 = vmul.f32 %v1220, 1.442695
    %v1222 = vpow.pop %v1221
    %v1223 = vadd.f32 %v1222, 1.0
    %v1224 = vrcp.pop %v1223
    %v1225 = vmul.f32 1.0, %v1224
    %1227 = vrot.lane.b32.xlu0 %v1217, 32
    %v1228 = vpop.permute.xlu0 %1227
    %v1230 = vmul.f32 %v1225, %v1228
    %1232 = vrot.lane.b32.xlu0 %v1230, 64
    %v1233 = vpop.permute.xlu0 %1232
    %v1235 = vadd.f32 %v1217, %v1233
    %v1236 = vtanh.pop %v1235
    %v1237 = vsub.f32 1.0, %v1225
    %1239 = vrot.lane.b32.xlu0 %v1236, 96
    %v1240 = vpop.permute.xlu0 %1239
    %v1242 = vmul.f32 %v1237, %v1240
    %v1243 = vmul.f32 %v1225, %v1142
    %v1244 = vadd.f32 %v1242, %v1243
    %v1245 = vld [vmem:[%s2 + $0x4] sm:$0x1]
    %v1246 = vld [vmem:[%s2 + $0x5] sm:$0x1]
    %v1247 = vlaneseq
    %v1248 = vshrl.u32 %v1247, 7
    %v1249 = vsub.s32 0, %v1248
    %v1250 = vrot.slane %v1245, %v1249
    %1252 = vrot.lane.b32.xlu0 %v1250, 32
    %v1253 = vpop.permute.xlu0 %1252
    %v1255 = vmul.f32 %v1244, %v1253
    %1257 = vrot.lane.b32.xlu0 %v1255, 96
    %v1258 = vpop.permute.xlu0 %1257
    %vm1260 = vcmask 254976
    %v1261 = vsel %vm1260, %v1258, 0.0
    %1262 = vadd.xlane.f32.xlu0 %v1261
    %v1263 = vpop.xlane.xlu0 %1262
    %v1264 = vlaneseq
    %v1265 = vshrl.u32 %v1264, 7
    %v1266 = vsub.s32 0, %v1265
    %v1267 = vrot.slane %v1246, %v1266
    %v1268 = vadd.f32 %v1263, %v1267
    %vm1269 = vcmask 1024
    %1270 = vst.msk [vmem:[%s3] sm:$0x3] %vm1269, %v1268
    // Predicated region
    $region18: #{gru_forward.1} parent=1 // pred_check
      _
    $region19: #{gru_forward.1} parent=1 // pred_check_branch
      %1272 = sbr.rel (0) target = $region21
    $region20: #{gru_forward.1} parent=1 // pred_region
      _
    $region21: #{gru_forward.1} parent=1 // pred_fallthru
      _
    // Predicated region
    $region22: #{gru_forward.1} parent=1 // pred_check
      _
    $region23: #{gru_forward.1} parent=1 // pred_check_branch
      %1274 = sbr.rel (0) target = $region25
    $region24: #{gru_forward.1} parent=1 // pred_region
      _
    $region25: #{gru_forward.1} parent=1 // pred_fallthru
      _
    %1275 = vsyncpa [#allocation3], 1

</llo_original>
